<compile_context>
chip_gen: v7x
topology: tpu7x:2x2x1
jax: 0.10.0
libtpu: 0.0.40
codegen_flags: <defaults>
</compile_context>

<pallas_src>
import functools

import jax
import jax.numpy as jnp
from jax import lax
from jax.experimental import pallas as pl
from jax.experimental.pallas import tpu as pltpu  # noqa: F401


# ------------------------------ in-kernel math ------------------------------

def _elu(y):
    # ELU(alpha=1): y if y > 0 else exp(y) - 1
    return jnp.where(y > 0, y, jnp.exp(jnp.minimum(y, 0.0)) - 1.0)


def _layernorm(x, g, b, eps=1e-5):
    mean = jnp.mean(x, axis=-1, keepdims=True)
    var = jnp.mean((x - mean) ** 2, axis=-1, keepdims=True)
    return (x - mean) * lax.rsqrt(var + eps) * g + b


# ------------------------------ fused kernel --------------------------------

def _link_predictor_kernel(nf_ref, xy_ref, s192_ref, s32_ref, o_ref, *, cfg):
    in_ch = cfg["in_ch"]
    hidden = cfg["hidden"]
    H = cfg["heads"]
    L = cfg["layers"]
    concat = cfg["concat"]
    o192 = cfg["o192"]
    o32 = cfg["o32"]
    D = hidden                       # out_channels == hidden_channels per head
    HD = H * D
    N = nf_ref.shape[0]
    E2 = xy_ref.shape[0]
    E = E2 // 2

    def vec(name, l=None, width=hidden):
        r = o192[name] if l is None else o192[name][l]
        return s192_ref[r:r + 1, 0:width]

    # ---------- encoder input projection: fc0 -> LayerNorm -> ELU ----------
    fc0_w = s32_ref[o32["fc0_w"]:o32["fc0_w"] + in_ch, :]
    z = jnp.dot(nf_ref[...], fc0_w,
                preferred_element_type=jnp.float32) + vec("fc0_b")
    z = _elu(_layernorm(z, vec("ln0_g"), vec("ln0_b")))
    # Dropout (eval mode) -> identity.

    # ---------- GraphTransformerConv layers (fully fused) -------------------
    for l in range(L):
        wq_base = o192["wqkv"] + l * hidden
        wqkv = s192_ref[wq_base:wq_base + hidden, :]          # [hidden, 3*H*D]
        bqkv = s192_ref[o192["bqkv"][l]:o192["bqkv"][l] + 1, :]
        # single lane-dense QKV matmul; 1/sqrt(D) already folded into Q cols
        qkv = jnp.dot(z, wqkv, preferred_element_type=jnp.float32) + bqkv

        z_attn = jnp.zeros((N, hidden), jnp.float32)
        for h in range(H):
            q = qkv[:, h * D:(h + 1) * D]
            k = qkv[:, HD + h * D:HD + (h + 1) * D]
            v = qkv[:, 2 * HD + h * D:2 * HD + (h + 1) * D]
            s = lax.dot_general(q, k, (((1,), (1,)), ((), ())),
                                preferred_element_type=jnp.float32)
            m = jnp.max(s, axis=-1, keepdims=True)
            p = jnp.exp(s - m)
            head = jnp.dot(p, v, preferred_element_type=jnp.float32) \
                / jnp.sum(p, axis=-1, keepdims=True)          # exact softmax
            # per-head Wo row-block (avoids the heads concatenate)
            wo_h = s32_ref[o32["wo"][l] + h * D:o32["wo"][l] + (h + 1) * D, :]
            z_attn = z_attn + jnp.dot(head, wo_h,
                                      preferred_element_type=jnp.float32)
        # residual add -> LayerNorm -> ELU (dropout = identity)
        z = _elu(_layernorm(z_attn + vec("bo", l) + z,
                            vec("ln_g", l), vec("ln_b", l)))

    # ---------- encoder output projection: fc1 ------------------------------
    node_feat = jnp.dot(z, s32_ref[o32["fc1_w"]:o32["fc1_w"] + hidden, :],
                        preferred_element_type=jnp.float32) + vec("fc1_b")

    # ---------- merged edge gather: ONE one-hot matmul for x and y ----------
    col = lax.broadcasted_iota(jnp.int32, (E2, N), 1)
    onehot = (col == xy_ref[...]).astype(jnp.float32)          # [2E, N]
    gathered = jnp.dot(onehot, node_feat,
                       preferred_element_type=jnp.float32)     # [2E, hidden]
    h_x = gathered[0:E, :]
    h_y = gathered[E:E2, :]

    # ---------- link MLP: Linear -> BN(eval affine) -> ELU -> Linear -> σ ---
    lp1_top = s32_ref[o32["lp1_top"]:o32["lp1_top"] + hidden, :]
    if concat:
        lp1_bot = s32_ref[o32["lp1_bot"]:o32["lp1_bot"] + hidden, :]
        a = (jnp.dot(h_x, lp1_top, preferred_element_type=jnp.float32)
             + jnp.dot(h_y, lp1_bot, preferred_element_type=jnp.float32)
             + vec("lp1_b"))
    else:
        a = jnp.dot(h_x * h_y, lp1_top,
                    preferred_element_type=jnp.float32) + vec("lp1_b")
    a = _elu(a * vec("bn_scale") + vec("bn_shift"))
    # lane-dense logits: [1, hidden] x [E, hidden]^T -> [1, E]
    logit = lax.dot_general(vec("lp2_w"), a, (((1,), (1,)), ((), ())),
                            preferred_element_type=jnp.float32) \
        + vec("lp2_b", width=1)
    o_ref[...] = 1.0 / (1.0 + jnp.exp(-logit))     # exact sigmoid, stays [0,1]


# ----------------------------- parameter packing ------------------------------

def pack_params(params, *, in_ch, hidden, num_layers, num_heads, decoding):
    """Pack all weights/vectors into two contiguous f32 slabs + static offsets."""
    H, D = num_heads, hidden
    HD = H * D
    W = 3 * HD
    scale = 1.0 / float(D) ** 0.5
    concat = (decoding == "concat")

    # ---- slab192: fused QKV weights + every bias / norm vector (W lanes) ----
    chunks, o192 = [], {"bqkv": [], "bo": [], "ln_g": [], "ln_b": []}
    row = 0

    def put(arr, key=None, is_list=False):
        nonlocal row
        a = jnp.asarray(arr, jnp.float32)
        if a.ndim == 1:
            a = a.reshape(1, -1)
        if a.shape[1] < W:
            a = jnp.pad(a, ((0, 0), (0, W - a.shape[1])))
        if key is not None:
            if is_list:
                o192[key].append(row)
            else:
                o192[key] = row
        chunks.append(a)
        row += a.shape[0]

    o192["wqkv"] = row
    for l in range(num_layers):
        wqkv = params["wqkv"][l]
        wqkv = wqkv.at[:, :HD].multiply(scale)        # fold 1/sqrt(D) into Q
        put(wqkv)
    put(params["fc0_b"], "fc0_b")
    put(params["ln0_g"], "ln0_g")
    put(params["ln0_b"], "ln0_b")
    for l in range(num_layers):
        bqkv = params["bqkv"][l]
        bqkv = bqkv.at[:, :HD].multiply(scale)        # fold 1/sqrt(D) into Q bias
        put(bqkv, "bqkv", True)
        put(params["bo"][l], "bo", True)
        put(params["ln_g"][l], "ln_g", True)
        put(params["ln_b"][l], "ln_b", True)
    put(params["fc1_b"], "fc1_b")
    put(params["lp1_b"], "lp1_b")
    bn_scale = params["bn_g"] * lax.rsqrt(params["bn_var"] + 1e-5)
    bn_shift = params["bn_b"] - params["bn_mu"] * bn_scale
    put(bn_scale, "bn_scale")
    put(bn_shift, "bn_shift")
    put(params["lp2_w"], "lp2_w")
    put(params["lp2_b"], "lp2_b")
    slab192 = jnp.concatenate(chunks, axis=0)

    # ---- slab32: every hidden-column weight matrix, stacked along rows ----
    chunks32, o32 = [], {"wo": []}
    row32 = 0

    def put32(arr, key=None, is_list=False, pad_rows_to=None):
        nonlocal row32
        a = jnp.asarray(arr, jnp.float32)
        if key is not None:
            if is_list:
                o32[key].append(row32)
            else:
                o32[key] = row32
        if pad_rows_to is not None and a.shape[0] < pad_rows_to:
            a = jnp.pad(a, ((0, pad_rows_to - a.shape[0]), (0, 0)))
        chunks32.append(a)
        row32 += a.shape[0]

    put32(params["fc0_w"], "fc0_w", pad_rows_to=-(-in_ch // 8) * 8)
    for l in range(num_layers):
        put32(params["wo"][l], "wo", True)
    put32(params["fc1_w"], "fc1_w")
    if concat:
        put32(params["lp1_w"][:hidden, :], "lp1_top")
        put32(params["lp1_w"][hidden:, :], "lp1_bot")
    else:
        put32(params["lp1_w"], "lp1_top")
    slab32 = jnp.concatenate(chunks32, axis=0)

    cfg = dict(in_ch=in_ch, hidden=hidden, heads=num_heads, layers=num_layers,
               concat=concat, o192=o192, o32=o32)
    return slab192, slab32, cfg


# ------------------------------- wrapper -------------------------------------

def link_predictor_forward(slab192, slab32, cfg, x_idx, y_idx, node_features):
    E = x_idx.shape[0]
    xy = jnp.concatenate([x_idx, y_idx]).astype(jnp.int32).reshape(2 * E, 1)
    kernel = functools.partial(_link_predictor_kernel, cfg=cfg)
    # grid=() single invocation: every operand is a full-array VMEM block;
    # only 4 input DMAs (node feats, fused indices, 2 packed slabs).
    pred = pl.pallas_call(
        kernel,
        out_shape=jax.ShapeDtypeStruct((1, E), jnp.float32),   # lane-dense
    )(node_features.astype(jnp.float32), xy, slab192, slab32)
    return pred.reshape(-1)   # .squeeze()


# ----------------------------- parameter init --------------------------------

def init_linear_params(key, fan_in, fan_out):
    kw, kb = jax.random.split(key)
    bound = 1.0 / float(fan_in) ** 0.5
    w = jax.random.uniform(kw, (fan_in, fan_out), jnp.float32, -bound, bound)
    b = jax.random.uniform(kb, (1, fan_out), jnp.float32, -bound, bound)
    return w, b


def init_params(key, in_ch, hidden, out_ch, num_layers, num_heads, decoding):
    keys = iter(jax.random.split(key, 4 * num_layers + 8))
    p = {}
    p["fc0_w"], p["fc0_b"] = init_linear_params(next(keys), in_ch, hidden)
    p["ln0_g"] = jnp.ones((1, hidden), jnp.float32)
    p["ln0_b"] = jnp.zeros((1, hidden), jnp.float32)
    hd = hidden * num_heads
    wqkv, bqkv, wo, bo, lng, lnb = [], [], [], [], [], []
    for _ in range(num_layers):
        wq, bq = init_linear_params(next(keys), hidden, hd)
        wk, bk = init_linear_params(next(keys), hidden, hd)
        wv, bv = init_linear_params(next(keys), hidden, hd)
        w_o, b_o = init_linear_params(next(keys), hd, hidden)
        wqkv.append(jnp.concatenate([wq, wk, wv], axis=1))   # [hidden, 3*H*D]
        bqkv.append(jnp.concatenate([bq, bk, bv], axis=1))   # [1, 3*H*D]
        wo.append(w_o)
        bo.append(b_o)
        lng.append(jnp.ones((1, hidden), jnp.float32))
        lnb.append(jnp.zeros((1, hidden), jnp.float32))
    p["wqkv"] = jnp.stack(wqkv)
    p["bqkv"] = jnp.stack(bqkv)
    p["wo"] = jnp.stack(wo)
    p["bo"] = jnp.stack(bo)
    p["ln_g"] = jnp.stack(lng)
    p["ln_b"] = jnp.stack(lnb)
    p["fc1_w"], p["fc1_b"] = init_linear_params(next(keys), hidden, hidden)
    din = out_ch * 2 if decoding == "concat" else out_ch
    p["lp1_w"], p["lp1_b"] = init_linear_params(next(keys), din, out_ch)
    p["bn_g"] = jnp.ones((1, out_ch), jnp.float32)
    p["bn_b"] = jnp.zeros((1, out_ch), jnp.float32)
    p["bn_mu"] = jnp.zeros((1, out_ch), jnp.float32)
    p["bn_var"] = jnp.ones((1, out_ch), jnp.float32)
    w2, b2 = init_linear_params(next(keys), out_ch, 1)
    p["lp2_w"] = w2.reshape(1, out_ch)
    p["lp2_b"] = b2.reshape(1, 1)
    return p


# --------------------------- pure-JAX reference ------------------------------

def reference_forward(params, x_idx, y_idx, node_features, *,
                      num_heads, decoding):
    def ln(x, g, b):
        m = jnp.mean(x, -1, keepdims=True)
        v = jnp.mean((x - m) ** 2, -1, keepdims=True)
        return (x - m) / jnp.sqrt(v + 1e-5) * g + b

    def elu(x):
        return jnp.where(x > 0, x, jnp.exp(jnp.minimum(x, 0.0)) - 1.0)

    hidden = params["fc0_w"].shape[1]
    N = node_features.shape[0]
    z = node_features @ params["fc0_w"] + params["fc0_b"]
    z = elu(ln(z, params["ln0_g"], params["ln0_b"]))
    for l in range(params["wqkv"].shape[0]):
        qkv = z @ params["wqkv"][l] + params["bqkv"][l]
        q, k, v = jnp.split(qkv, 3, axis=1)
        q = q.reshape(N, num_heads, hidden).transpose(1, 0, 2)
        k = k.reshape(N, num_heads, hidden).transpose(1, 0, 2)
        v = v.reshape(N, num_heads, hidden).transpose(1, 0, 2)
        s = jnp.einsum("hqd,hkd->hqk", q, k) / hidden ** 0.5
        p = jax.nn.softmax(s, axis=-1)
        o = jnp.einsum("hqk,hkd->hqd", p, v).transpose(1, 0, 2)
        o = o.reshape(N, num_heads * hidden)
        z = elu(ln(o @ params["wo"][l] + params["bo"][l] + z,
                   params["ln_g"][l], params["ln_b"][l]))
    nf = z @ params["fc1_w"] + params["fc1_b"]
    hx, hy = nf[x_idx], nf[y_idx]
    h = jnp.concatenate([hx, hy], axis=1) if decoding == "concat" else hx * hy
    a = h @ params["lp1_w"] + params["lp1_b"]
    a = (a - params["bn_mu"]) / jnp.sqrt(params["bn_var"] + 1e-5) \
        * params["bn_g"] + params["bn_b"]
    a = elu(a)
    logit = jnp.sum(a * params["lp2_w"], axis=-1) + params["lp2_b"][0, 0]
    return jax.nn.sigmoid(logit)


# ---------------------------------- main --------------------------------------

if __name__ == "__main__":
    IN_CH = 12
    HIDDEN = 32
    OUT_CH = 32          # encoder output width == link-predictor width
    NUM_LAYERS = 2
    NUM_HEADS = 2
    DECODING = "concat"
    N_NODES = 16
    N_EDGES = 8

    # The PyTorch module implicitly requires this for its forward to typecheck.
    assert OUT_CH == HIDDEN

    key = jax.random.PRNGKey(0)
    kfeat, kparam, kx, ky = jax.random.split(key, 4)
    node_features = jax.random.normal(kfeat, (N_NODES, IN_CH), jnp.float32)
    x_idx = jax.random.randint(kx, (N_EDGES,), 0, N_NODES)
    y_idx = jax.random.randint(ky, (N_EDGES,), 0, N_NODES)

    params = init_params(kparam, IN_CH, HIDDEN, OUT_CH,
                         NUM_LAYERS, NUM_HEADS, DECODING)
    slab192, slab32, cfg = pack_params(
        params, in_ch=IN_CH, hidden=HIDDEN, num_layers=NUM_LAYERS,
        num_heads=NUM_HEADS, decoding=DECODING)

    pred = link_predictor_forward(slab192, slab32, cfg,
                                  x_idx, y_idx, node_features)
    pred = jax.block_until_ready(pred)

    assert pred.shape == (N_EDGES,)
    assert bool(jnp.all(jnp.isfinite(pred)))
    assert bool(jnp.all((pred >= 0.0) & (pred <= 1.0)))

    ref = reference_forward(params, x_idx, y_idx, node_features,
                            num_heads=NUM_HEADS, decoding=DECODING)
    assert bool(jnp.max(jnp.abs(pred - ref)) < 1e-4)   # exact softmax/sigmoid

    print("KERNEL_OK")
</pallas_src>

<mosaic_0001>
module attributes {stable_mosaic.version = 11 : i64} {
  func.func @_link_predictor_kernel(%arg0: memref<16x12xf32, #tpu.memory_space<vmem>>, %arg1: memref<16x1xi32, #tpu.memory_space<vmem>>, %arg2: memref<81x192xf32, #tpu.memory_space<vmem>>, %arg3: memref<240x32xf32, #tpu.memory_space<vmem>>, %arg4: memref<1x8xf32, #tpu.memory_space<vmem>>) attributes {dimension_semantics = [], scalar_prefetch = 0 : i64, scratch_operands = 0 : i64, tpu.core_type = #tpu.core_type<tc>} {
    %c0 = arith.constant 0 : index
    %c0_0 = arith.constant 0 : index
    %0 = vector.load %arg3[%c0, %c0_0] : memref<240x32xf32, #tpu.memory_space<vmem>>, vector<12x32xf32>
    %c0_1 = arith.constant 0 : index
    %c0_2 = arith.constant 0 : index
    %1 = vector.load %arg0[%c0_1, %c0_2] : memref<16x12xf32, #tpu.memory_space<vmem>>, vector<16x12xf32>
    %cst = arith.constant dense<0.000000e+00> : vector<16x32xf32>
    %2 = tpu.matmul %1, %0, %cst {dimension_numbers = #tpu.dot_dimension_numbers<[1], [0], [0], [1], [0, 0, 1, 1], [], []>} : vector<16x12xf32>, vector<12x32xf32>, vector<16x32xf32> -> vector<16x32xf32>
    %c64 = arith.constant 64 : index
    %c0_3 = arith.constant 0 : index
    %3 = vector.load %arg2[%c64, %c0_3] : memref<81x192xf32, #tpu.memory_space<vmem>>, vector<1x32xf32>
    %4 = vector.broadcast %3 : vector<1x32xf32> to vector<16x32xf32>
    %5 = arith.addf %2, %4 : vector<16x32xf32>
    %c65 = arith.constant 65 : index
    %c0_4 = arith.constant 0 : index
    %6 = vector.load %arg2[%c65, %c0_4] : memref<81x192xf32, #tpu.memory_space<vmem>>, vector<1x32xf32>
    %c66 = arith.constant 66 : index
    %c0_5 = arith.constant 0 : index
    %7 = vector.load %arg2[%c66, %c0_5] : memref<81x192xf32, #tpu.memory_space<vmem>>, vector<1x32xf32>
    %cst_6 = arith.constant dense<0.000000e+00> : vector<16xf32>
    %8 = vector.multi_reduction <add>, %5, %cst_6 [1] : vector<16x32xf32> to vector<16xf32>
    %9 = vector.shape_cast %8 : vector<16xf32> to vector<16x1xf32>
    %cst_7 = arith.constant 3.200000e+01 : f32
    %10 = vector.broadcast %cst_7 : f32 to vector<16x1xf32>
    %11 = arith.divf %9, %10 : vector<16x1xf32>
    %12 = vector.broadcast %11 : vector<16x1xf32> to vector<16x32xf32>
    %13 = arith.subf %5, %12 : vector<16x32xf32>
    %14 = arith.mulf %13, %13 : vector<16x32xf32>
    %cst_8 = arith.constant dense<0.000000e+00> : vector<16xf32>
    %15 = vector.multi_reduction <add>, %14, %cst_8 [1] : vector<16x32xf32> to vector<16xf32>
    %16 = vector.shape_cast %15 : vector<16xf32> to vector<16x1xf32>
    %cst_9 = arith.constant 3.200000e+01 : f32
    %17 = vector.broadcast %cst_9 : f32 to vector<16x1xf32>
    %18 = arith.divf %16, %17 : vector<16x1xf32>
    %19 = vector.broadcast %11 : vector<16x1xf32> to vector<16x32xf32>
    %20 = arith.subf %5, %19 : vector<16x32xf32>
    %cst_10 = arith.constant 9.99999974E-6 : f32
    %21 = vector.broadcast %cst_10 : f32 to vector<16x1xf32>
    %22 = arith.addf %18, %21 : vector<16x1xf32>
    %23 = math.rsqrt %22 : vector<16x1xf32>
    %24 = vector.broadcast %23 : vector<16x1xf32> to vector<16x32xf32>
    %25 = arith.mulf %20, %24 : vector<16x32xf32>
    %26 = vector.broadcast %6 : vector<1x32xf32> to vector<16x32xf32>
    %27 = arith.mulf %25, %26 : vector<16x32xf32>
    %28 = vector.broadcast %7 : vector<1x32xf32> to vector<16x32xf32>
    %29 = arith.addf %27, %28 : vector<16x32xf32>
    %cst_11 = arith.constant 0.000000e+00 : f32
    %30 = vector.broadcast %cst_11 : f32 to vector<16x32xf32>
    %31 = arith.cmpf ogt, %29, %30 : vector<16x32xf32>
    %cst_12 = arith.constant 0.000000e+00 : f32
    %32 = vector.broadcast %cst_12 : f32 to vector<16x32xf32>
    %33 = arith.minimumf %29, %32 : vector<16x32xf32>
    %34 = math.exp %33 : vector<16x32xf32>
    %cst_13 = arith.constant 1.000000e+00 : f32
    %35 = vector.broadcast %cst_13 : f32 to vector<16x32xf32>
    %36 = arith.subf %34, %35 : vector<16x32xf32>
    %37 = arith.select %31, %29, %36 : vector<16x32xi1>, vector<16x32xf32>
    %c0_14 = arith.constant 0 : index
    %c0_15 = arith.constant 0 : index
    %38 = vector.load %arg2[%c0_14, %c0_15] : memref<81x192xf32, #tpu.memory_space<vmem>>, vector<32x192xf32>
    %c67 = arith.constant 67 : index
    %c0_16 = arith.constant 0 : index
    %39 = vector.load %arg2[%c67, %c0_16] : memref<81x192xf32, #tpu.memory_space<vmem>>, vector<1x192xf32>
    %cst_17 = arith.constant dense<0.000000e+00> : vector<16x192xf32>
    %40 = tpu.matmul %37, %38, %cst_17 {dimension_numbers = #tpu.dot_dimension_numbers<[1], [0], [0], [1], [0, 0, 1, 1], [], []>} : vector<16x32xf32>, vector<32x192xf32>, vector<16x192xf32> -> vector<16x192xf32>
    %41 = vector.broadcast %39 : vector<1x192xf32> to vector<16x192xf32>
    %42 = arith.addf %40, %41 : vector<16x192xf32>
    %cst_18 = arith.constant 0.000000e+00 : f32
    %43 = vector.broadcast %cst_18 : f32 to vector<16x32xf32>
    %44 = vector.extract_strided_slice %42 {offsets = [0, 0], sizes = [16, 32], strides = [1, 1]} : vector<16x192xf32> to vector<16x32xf32>
    %45 = vector.extract_strided_slice %42 {offsets = [0, 64], sizes = [16, 32], strides = [1, 1]} : vector<16x192xf32> to vector<16x32xf32>
    %46 = vector.extract_strided_slice %42 {offsets = [0, 128], sizes = [16, 32], strides = [1, 1]} : vector<16x192xf32> to vector<16x32xf32>
    %cst_19 = arith.constant dense<0.000000e+00> : vector<16x16xf32>
    %47 = tpu.matmul %44, %45, %cst_19 {dimension_numbers = #tpu.dot_dimension_numbers<[1], [1], [0], [0], [0, 0, 1, 0], [], []>} : vector<16x32xf32>, vector<16x32xf32>, vector<16x16xf32> -> vector<16x16xf32>
    %cst_20 = arith.constant dense<0xFF800000> : vector<16xf32>
    %48 = vector.multi_reduction <maximumf>, %47, %cst_20 [1] : vector<16x16xf32> to vector<16xf32>
    %49 = vector.shape_cast %48 : vector<16xf32> to vector<16x1xf32>
    %50 = vector.broadcast %49 : vector<16x1xf32> to vector<16x16xf32>
    %51 = arith.subf %47, %50 : vector<16x16xf32>
    %52 = math.exp %51 : vector<16x16xf32>
    %cst_21 = arith.constant dense<0.000000e+00> : vector<16x32xf32>
    %53 = tpu.matmul %52, %46, %cst_21 {dimension_numbers = #tpu.dot_dimension_numbers<[1], [0], [0], [1], [0, 0, 1, 1], [], []>} : vector<16x16xf32>, vector<16x32xf32>, vector<16x32xf32> -> vector<16x32xf32>
    %cst_22 = arith.constant dense<0.000000e+00> : vector<16xf32>
    %54 = vector.multi_reduction <add>, %52, %cst_22 [1] : vector<16x16xf32> to vector<16xf32>
    %55 = vector.shape_cast %54 : vector<16xf32> to vector<16x1xf32>
    %56 = vector.broadcast %55 : vector<16x1xf32> to vector<16x32xf32>
    %57 = arith.divf %53, %56 : vector<16x32xf32>
    %c16 = arith.constant 16 : index
    %c0_23 = arith.constant 0 : index
    %58 = vector.load %arg3[%c16, %c0_23] : memref<240x32xf32, #tpu.memory_space<vmem>>, vector<32x32xf32>
    %cst_24 = arith.constant dense<0.000000e+00> : vector<16x32xf32>
    %59 = tpu.matmul %57, %58, %cst_24 {dimension_numbers = #tpu.dot_dimension_numbers<[1], [0], [0], [1], [0, 0, 1, 1], [], []>} : vector<16x32xf32>, vector<32x32xf32>, vector<16x32xf32> -> vector<16x32xf32>
    %60 = arith.addf %43, %59 : vector<16x32xf32>
    %61 = vector.extract_strided_slice %42 {offsets = [0, 32], sizes = [16, 32], strides = [1, 1]} : vector<16x192xf32> to vector<16x32xf32>
    %62 = vector.extract_strided_slice %42 {offsets = [0, 96], sizes = [16, 32], strides = [1, 1]} : vector<16x192xf32> to vector<16x32xf32>
    %63 = vector.extract_strided_slice %42 {offsets = [0, 160], sizes = [16, 32], strides = [1, 1]} : vector<16x192xf32> to vector<16x32xf32>
    %cst_25 = arith.constant dense<0.000000e+00> : vector<16x16xf32>
    %64 = tpu.matmul %61, %62, %cst_25 {dimension_numbers = #tpu.dot_dimension_numbers<[1], [1], [0], [0], [0, 0, 1, 0], [], []>} : vector<16x32xf32>, vector<16x32xf32>, vector<16x16xf32> -> vector<16x16xf32>
    %cst_26 = arith.constant dense<0xFF800000> : vector<16xf32>
    %65 = vector.multi_reduction <maximumf>, %64, %cst_26 [1] : vector<16x16xf32> to vector<16xf32>
    %66 = vector.shape_cast %65 : vector<16xf32> to vector<16x1xf32>
    %67 = vector.broadcast %66 : vector<16x1xf32> to vector<16x16xf32>
    %68 = arith.subf %64, %67 : vector<16x16xf32>
    %69 = math.exp %68 : vector<16x16xf32>
    %cst_27 = arith.constant dense<0.000000e+00> : vector<16x32xf32>
    %70 = tpu.matmul %69, %63, %cst_27 {dimension_numbers = #tpu.dot_dimension_numbers<[1], [0], [0], [1], [0, 0, 1, 1], [], []>} : vector<16x16xf32>, vector<16x32xf32>, vector<16x32xf32> -> vector<16x32xf32>
    %cst_28 = arith.constant dense<0.000000e+00> : vector<16xf32>
    %71 = vector.multi_reduction <add>, %69, %cst_28 [1] : vector<16x16xf32> to vector<16xf32>
    %72 = vector.shape_cast %71 : vector<16xf32> to vector<16x1xf32>
    %73 = vector.broadcast %72 : vector<16x1xf32> to vector<16x32xf32>
    %74 = arith.divf %70, %73 : vector<16x32xf32>
    %c48 = arith.constant 48 : index
    %c0_29 = arith.constant 0 : index
    %75 = vector.load %arg3[%c48, %c0_29] : memref<240x32xf32, #tpu.memory_space<vmem>>, vector<32x32xf32>
    %cst_30 = arith.constant dense<0.000000e+00> : vector<16x32xf32>
    %76 = tpu.matmul %74, %75, %cst_30 {dimension_numbers = #tpu.dot_dimension_numbers<[1], [0], [0], [1], [0, 0, 1, 1], [], []>} : vector<16x32xf32>, vector<32x32xf32>, vector<16x32xf32> -> vector<16x32xf32>
    %77 = arith.addf %60, %76 : vector<16x32xf32>
    %c68 = arith.constant 68 : index
    %c0_31 = arith.constant 0 : index
    %78 = vector.load %arg2[%c68, %c0_31] : memref<81x192xf32, #tpu.memory_space<vmem>>, vector<1x32xf32>
    %79 = vector.broadcast %78 : vector<1x32xf32> to vector<16x32xf32>
    %80 = arith.addf %77, %79 : vector<16x32xf32>
    %81 = arith.addf %80, %37 : vector<16x32xf32>
    %c69 = arith.constant 69 : index
    %c0_32 = arith.constant 0 : index
    %82 = vector.load %arg2[%c69, %c0_32] : memref<81x192xf32, #tpu.memory_space<vmem>>, vector<1x32xf32>
    %c70 = arith.constant 70 : index
    %c0_33 = arith.constant 0 : index
    %83 = vector.load %arg2[%c70, %c0_33] : memref<81x192xf32, #tpu.memory_space<vmem>>, vector<1x32xf32>
    %cst_34 = arith.constant dense<0.000000e+00> : vector<16xf32>
    %84 = vector.multi_reduction <add>, %81, %cst_34 [1] : vector<16x32xf32> to vector<16xf32>
    %85 = vector.shape_cast %84 : vector<16xf32> to vector<16x1xf32>
    %cst_35 = arith.constant 3.200000e+01 : f32
    %86 = vector.broadcast %cst_35 : f32 to vector<16x1xf32>
    %87 = arith.divf %85, %86 : vector<16x1xf32>
    %88 = vector.broadcast %87 : vector<16x1xf32> to vector<16x32xf32>
    %89 = arith.subf %81, %88 : vector<16x32xf32>
    %90 = arith.mulf %89, %89 : vector<16x32xf32>
    %cst_36 = arith.constant dense<0.000000e+00> : vector<16xf32>
    %91 = vector.multi_reduction <add>, %90, %cst_36 [1] : vector<16x32xf32> to vector<16xf32>
    %92 = vector.shape_cast %91 : vector<16xf32> to vector<16x1xf32>
    %cst_37 = arith.constant 3.200000e+01 : f32
    %93 = vector.broadcast %cst_37 : f32 to vector<16x1xf32>
    %94 = arith.divf %92, %93 : vector<16x1xf32>
    %95 = vector.broadcast %87 : vector<16x1xf32> to vector<16x32xf32>
    %96 = arith.subf %81, %95 : vector<16x32xf32>
    %cst_38 = arith.constant 9.99999974E-6 : f32
    %97 = vector.broadcast %cst_38 : f32 to vector<16x1xf32>
    %98 = arith.addf %94, %97 : vector<16x1xf32>
    %99 = math.rsqrt %98 : vector<16x1xf32>
    %100 = vector.broadcast %99 : vector<16x1xf32> to vector<16x32xf32>
    %101 = arith.mulf %96, %100 : vector<16x32xf32>
    %102 = vector.broadcast %82 : vector<1x32xf32> to vector<16x32xf32>
    %103 = arith.mulf %101, %102 : vector<16x32xf32>
    %104 = vector.broadcast %83 : vector<1x32xf32> to vector<16x32xf32>
    %105 = arith.addf %103, %104 : vector<16x32xf32>
    %cst_39 = arith.constant 0.000000e+00 : f32
    %106 = vector.broadcast %cst_39 : f32 to vector<16x32xf32>
    %107 = arith.cmpf ogt, %105, %106 : vector<16x32xf32>
    %cst_40 = arith.constant 0.000000e+00 : f32
    %108 = vector.broadcast %cst_40 : f32 to vector<16x32xf32>
    %109 = arith.minimumf %105, %108 : vector<16x32xf32>
    %110 = math.exp %109 : vector<16x32xf32>
    %cst_41 = arith.constant 1.000000e+00 : f32
    %111 = vector.broadcast %cst_41 : f32 to vector<16x32xf32>
    %112 = arith.subf %110, %111 : vector<16x32xf32>
    %113 = arith.select %107, %105, %112 : vector<16x32xi1>, vector<16x32xf32>
    %c32 = arith.constant 32 : index
    %c0_42 = arith.constant 0 : index
    %114 = vector.load %arg2[%c32, %c0_42] : memref<81x192xf32, #tpu.memory_space<vmem>>, vector<32x192xf32>
    %c71 = arith.constant 71 : index
    %c0_43 = arith.constant 0 : index
    %115 = vector.load %arg2[%c71, %c0_43] : memref<81x192xf32, #tpu.memory_space<vmem>>, vector<1x192xf32>
    %cst_44 = arith.constant dense<0.000000e+00> : vector<16x192xf32>
    %116 = tpu.matmul %113, %114, %cst_44 {dimension_numbers = #tpu.dot_dimension_numbers<[1], [0], [0], [1], [0, 0, 1, 1], [], []>} : vector<16x32xf32>, vector<32x192xf32>, vector<16x192xf32> -> vector<16x192xf32>
    %117 = vector.broadcast %115 : vector<1x192xf32> to vector<16x192xf32>
    %118 = arith.addf %116, %117 : vector<16x192xf32>
    %cst_45 = arith.constant 0.000000e+00 : f32
    %119 = vector.broadcast %cst_45 : f32 to vector<16x32xf32>
    %120 = vector.extract_strided_slice %118 {offsets = [0, 0], sizes = [16, 32], strides = [1, 1]} : vector<16x192xf32> to vector<16x32xf32>
    %121 = vector.extract_strided_slice %118 {offsets = [0, 64], sizes = [16, 32], strides = [1, 1]} : vector<16x192xf32> to vector<16x32xf32>
    %122 = vector.extract_strided_slice %118 {offsets = [0, 128], sizes = [16, 32], strides = [1, 1]} : vector<16x192xf32> to vector<16x32xf32>
    %cst_46 = arith.constant dense<0.000000e+00> : vector<16x16xf32>
    %123 = tpu.matmul %120, %121, %cst_46 {dimension_numbers = #tpu.dot_dimension_numbers<[1], [1], [0], [0], [0, 0, 1, 0], [], []>} : vector<16x32xf32>, vector<16x32xf32>, vector<16x16xf32> -> vector<16x16xf32>
    %cst_47 = arith.constant dense<0xFF800000> : vector<16xf32>
    %124 = vector.multi_reduction <maximumf>, %123, %cst_47 [1] : vector<16x16xf32> to vector<16xf32>
    %125 = vector.shape_cast %124 : vector<16xf32> to vector<16x1xf32>
    %126 = vector.broadcast %125 : vector<16x1xf32> to vector<16x16xf32>
    %127 = arith.subf %123, %126 : vector<16x16xf32>
    %128 = math.exp %127 : vector<16x16xf32>
    %cst_48 = arith.constant dense<0.000000e+00> : vector<16x32xf32>
    %129 = tpu.matmul %128, %122, %cst_48 {dimension_numbers = #tpu.dot_dimension_numbers<[1], [0], [0], [1], [0, 0, 1, 1], [], []>} : vector<16x16xf32>, vector<16x32xf32>, vector<16x32xf32> -> vector<16x32xf32>
    %cst_49 = arith.constant dense<0.000000e+00> : vector<16xf32>
    %130 = vector.multi_reduction <add>, %128, %cst_49 [1] : vector<16x16xf32> to vector<16xf32>
    %131 = vector.shape_cast %130 : vector<16xf32> to vector<16x1xf32>
    %132 = vector.broadcast %131 : vector<16x1xf32> to vector<16x32xf32>
    %133 = arith.divf %129, %132 : vector<16x32xf32>
    %c80 = arith.constant 80 : index
    %c0_50 = arith.constant 0 : index
    %134 = vector.load %arg3[%c80, %c0_50] : memref<240x32xf32, #tpu.memory_space<vmem>>, vector<32x32xf32>
    %cst_51 = arith.constant dense<0.000000e+00> : vector<16x32xf32>
    %135 = tpu.matmul %133, %134, %cst_51 {dimension_numbers = #tpu.dot_dimension_numbers<[1], [0], [0], [1], [0, 0, 1, 1], [], []>} : vector<16x32xf32>, vector<32x32xf32>, vector<16x32xf32> -> vector<16x32xf32>
    %136 = arith.addf %119, %135 : vector<16x32xf32>
    %137 = vector.extract_strided_slice %118 {offsets = [0, 32], sizes = [16, 32], strides = [1, 1]} : vector<16x192xf32> to vector<16x32xf32>
    %138 = vector.extract_strided_slice %118 {offsets = [0, 96], sizes = [16, 32], strides = [1, 1]} : vector<16x192xf32> to vector<16x32xf32>
    %139 = vector.extract_strided_slice %118 {offsets = [0, 160], sizes = [16, 32], strides = [1, 1]} : vector<16x192xf32> to vector<16x32xf32>
    %cst_52 = arith.constant dense<0.000000e+00> : vector<16x16xf32>
    %140 = tpu.matmul %137, %138, %cst_52 {dimension_numbers = #tpu.dot_dimension_numbers<[1], [1], [0], [0], [0, 0, 1, 0], [], []>} : vector<16x32xf32>, vector<16x32xf32>, vector<16x16xf32> -> vector<16x16xf32>
    %cst_53 = arith.constant dense<0xFF800000> : vector<16xf32>
    %141 = vector.multi_reduction <maximumf>, %140, %cst_53 [1] : vector<16x16xf32> to vector<16xf32>
    %142 = vector.shape_cast %141 : vector<16xf32> to vector<16x1xf32>
    %143 = vector.broadcast %142 : vector<16x1xf32> to vector<16x16xf32>
    %144 = arith.subf %140, %143 : vector<16x16xf32>
    %145 = math.exp %144 : vector<16x16xf32>
    %cst_54 = arith.constant dense<0.000000e+00> : vector<16x32xf32>
    %146 = tpu.matmul %145, %139, %cst_54 {dimension_numbers = #tpu.dot_dimension_numbers<[1], [0], [0], [1], [0, 0, 1, 1], [], []>} : vector<16x16xf32>, vector<16x32xf32>, vector<16x32xf32> -> vector<16x32xf32>
    %cst_55 = arith.constant dense<0.000000e+00> : vector<16xf32>
    %147 = vector.multi_reduction <add>, %145, %cst_55 [1] : vector<16x16xf32> to vector<16xf32>
    %148 = vector.shape_cast %147 : vector<16xf32> to vector<16x1xf32>
    %149 = vector.broadcast %148 : vector<16x1xf32> to vector<16x32xf32>
    %150 = arith.divf %146, %149 : vector<16x32xf32>
    %c112 = arith.constant 112 : index
    %c0_56 = arith.constant 0 : index
    %151 = vector.load %arg3[%c112, %c0_56] : memref<240x32xf32, #tpu.memory_space<vmem>>, vector<32x32xf32>
    %cst_57 = arith.constant dense<0.000000e+00> : vector<16x32xf32>
    %152 = tpu.matmul %150, %151, %cst_57 {dimension_numbers = #tpu.dot_dimension_numbers<[1], [0], [0], [1], [0, 0, 1, 1], [], []>} : vector<16x32xf32>, vector<32x32xf32>, vector<16x32xf32> -> vector<16x32xf32>
    %153 = arith.addf %136, %152 : vector<16x32xf32>
    %c72 = arith.constant 72 : index
    %c0_58 = arith.constant 0 : index
    %154 = vector.load %arg2[%c72, %c0_58] : memref<81x192xf32, #tpu.memory_space<vmem>>, vector<1x32xf32>
    %155 = vector.broadcast %154 : vector<1x32xf32> to vector<16x32xf32>
    %156 = arith.addf %153, %155 : vector<16x32xf32>
    %157 = arith.addf %156, %113 : vector<16x32xf32>
    %c73 = arith.constant 73 : index
    %c0_59 = arith.constant 0 : index
    %158 = vector.load %arg2[%c73, %c0_59] : memref<81x192xf32, #tpu.memory_space<vmem>>, vector<1x32xf32>
    %c74 = arith.constant 74 : index
    %c0_60 = arith.constant 0 : index
    %159 = vector.load %arg2[%c74, %c0_60] : memref<81x192xf32, #tpu.memory_space<vmem>>, vector<1x32xf32>
    %cst_61 = arith.constant dense<0.000000e+00> : vector<16xf32>
    %160 = vector.multi_reduction <add>, %157, %cst_61 [1] : vector<16x32xf32> to vector<16xf32>
    %161 = vector.shape_cast %160 : vector<16xf32> to vector<16x1xf32>
    %cst_62 = arith.constant 3.200000e+01 : f32
    %162 = vector.broadcast %cst_62 : f32 to vector<16x1xf32>
    %163 = arith.divf %161, %162 : vector<16x1xf32>
    %164 = vector.broadcast %163 : vector<16x1xf32> to vector<16x32xf32>
    %165 = arith.subf %157, %164 : vector<16x32xf32>
    %166 = arith.mulf %165, %165 : vector<16x32xf32>
    %cst_63 = arith.constant dense<0.000000e+00> : vector<16xf32>
    %167 = vector.multi_reduction <add>, %166, %cst_63 [1] : vector<16x32xf32> to vector<16xf32>
    %168 = vector.shape_cast %167 : vector<16xf32> to vector<16x1xf32>
    %cst_64 = arith.constant 3.200000e+01 : f32
    %169 = vector.broadcast %cst_64 : f32 to vector<16x1xf32>
    %170 = arith.divf %168, %169 : vector<16x1xf32>
    %171 = vector.broadcast %163 : vector<16x1xf32> to vector<16x32xf32>
    %172 = arith.subf %157, %171 : vector<16x32xf32>
    %cst_65 = arith.constant 9.99999974E-6 : f32
    %173 = vector.broadcast %cst_65 : f32 to vector<16x1xf32>
    %174 = arith.addf %170, %173 : vector<16x1xf32>
    %175 = math.rsqrt %174 : vector<16x1xf32>
    %176 = vector.broadcast %175 : vector<16x1xf32> to vector<16x32xf32>
    %177 = arith.mulf %172, %176 : vector<16x32xf32>
    %178 = vector.broadcast %158 : vector<1x32xf32> to vector<16x32xf32>
    %179 = arith.mulf %177, %178 : vector<16x32xf32>
    %180 = vector.broadcast %159 : vector<1x32xf32> to vector<16x32xf32>
    %181 = arith.addf %179, %180 : vector<16x32xf32>
    %cst_66 = arith.constant 0.000000e+00 : f32
    %182 = vector.broadcast %cst_66 : f32 to vector<16x32xf32>
    %183 = arith.cmpf ogt, %181, %182 : vector<16x32xf32>
    %cst_67 = arith.constant 0.000000e+00 : f32
    %184 = vector.broadcast %cst_67 : f32 to vector<16x32xf32>
    %185 = arith.minimumf %181, %184 : vector<16x32xf32>
    %186 = math.exp %185 : vector<16x32xf32>
    %cst_68 = arith.constant 1.000000e+00 : f32
    %187 = vector.broadcast %cst_68 : f32 to vector<16x32xf32>
    %188 = arith.subf %186, %187 : vector<16x32xf32>
    %189 = arith.select %183, %181, %188 : vector<16x32xi1>, vector<16x32xf32>
    %c144 = arith.constant 144 : index
    %c0_69 = arith.constant 0 : index
    %190 = vector.load %arg3[%c144, %c0_69] : memref<240x32xf32, #tpu.memory_space<vmem>>, vector<32x32xf32>
    %cst_70 = arith.constant dense<0.000000e+00> : vector<16x32xf32>
    %191 = tpu.matmul %189, %190, %cst_70 {dimension_numbers = #tpu.dot_dimension_numbers<[1], [0], [0], [1], [0, 0, 1, 1], [], []>} : vector<16x32xf32>, vector<32x32xf32>, vector<16x32xf32> -> vector<16x32xf32>
    %c75 = arith.constant 75 : index
    %c0_71 = arith.constant 0 : index
    %192 = vector.load %arg2[%c75, %c0_71] : memref<81x192xf32, #tpu.memory_space<vmem>>, vector<1x32xf32>
    %193 = vector.broadcast %192 : vector<1x32xf32> to vector<16x32xf32>
    %194 = arith.addf %191, %193 : vector<16x32xf32>
    %195 = tpu.iota {dimensions = array<i32: 1>} : vector<16x16xi32>
    %c0_72 = arith.constant 0 : index
    %c0_73 = arith.constant 0 : index
    %196 = vector.load %arg1[%c0_72, %c0_73] : memref<16x1xi32, #tpu.memory_space<vmem>>, vector<16x1xi32>
    %197 = vector.broadcast %196 : vector<16x1xi32> to vector<16x16xi32>
    %198 = arith.cmpi eq, %195, %197 : vector<16x16xi32>
    %199 = arith.extui %198 : vector<16x16xi1> to vector<16x16xi32>
    %200 = arith.sitofp %199 : vector<16x16xi32> to vector<16x16xf32>
    %cst_74 = arith.constant dense<0.000000e+00> : vector<16x32xf32>
    %201 = tpu.matmul %200, %194, %cst_74 {dimension_numbers = #tpu.dot_dimension_numbers<[1], [0], [0], [1], [0, 0, 1, 1], [], []>} : vector<16x16xf32>, vector<16x32xf32>, vector<16x32xf32> -> vector<16x32xf32>
    %202 = vector.extract_strided_slice %201 {offsets = [0, 0], sizes = [8, 32], strides = [1, 1]} : vector<16x32xf32> to vector<8x32xf32>
    %203 = vector.extract_strided_slice %201 {offsets = [8, 0], sizes = [8, 32], strides = [1, 1]} : vector<16x32xf32> to vector<8x32xf32>
    %c176 = arith.constant 176 : index
    %c0_75 = arith.constant 0 : index
    %204 = vector.load %arg3[%c176, %c0_75] : memref<240x32xf32, #tpu.memory_space<vmem>>, vector<32x32xf32>
    %c208 = arith.constant 208 : index
    %c0_76 = arith.constant 0 : index
    %205 = vector.load %arg3[%c208, %c0_76] : memref<240x32xf32, #tpu.memory_space<vmem>>, vector<32x32xf32>
    %cst_77 = arith.constant dense<0.000000e+00> : vector<8x32xf32>
    %206 = tpu.matmul %202, %204, %cst_77 {dimension_numbers = #tpu.dot_dimension_numbers<[1], [0], [0], [1], [0, 0, 1, 1], [], []>} : vector<8x32xf32>, vector<32x32xf32>, vector<8x32xf32> -> vector<8x32xf32>
    %cst_78 = arith.constant dense<0.000000e+00> : vector<8x32xf32>
    %207 = tpu.matmul %203, %205, %cst_78 {dimension_numbers = #tpu.dot_dimension_numbers<[1], [0], [0], [1], [0, 0, 1, 1], [], []>} : vector<8x32xf32>, vector<32x32xf32>, vector<8x32xf32> -> vector<8x32xf32>
    %208 = arith.addf %206, %207 : vector<8x32xf32>
    %c76 = arith.constant 76 : index
    %c0_79 = arith.constant 0 : index
    %209 = vector.load %arg2[%c76, %c0_79] : memref<81x192xf32, #tpu.memory_space<vmem>>, vector<1x32xf32>
    %210 = vector.broadcast %209 : vector<1x32xf32> to vector<8x32xf32>
    %211 = arith.addf %208, %210 : vector<8x32xf32>
    %c77 = arith.constant 77 : index
    %c0_80 = arith.constant 0 : index
    %212 = vector.load %arg2[%c77, %c0_80] : memref<81x192xf32, #tpu.memory_space<vmem>>, vector<1x32xf32>
    %213 = vector.broadcast %212 : vector<1x32xf32> to vector<8x32xf32>
    %214 = arith.mulf %211, %213 : vector<8x32xf32>
    %c78 = arith.constant 78 : index
    %c0_81 = arith.constant 0 : index
    %215 = vector.load %arg2[%c78, %c0_81] : memref<81x192xf32, #tpu.memory_space<vmem>>, vector<1x32xf32>
    %216 = vector.broadcast %215 : vector<1x32xf32> to vector<8x32xf32>
    %217 = arith.addf %214, %216 : vector<8x32xf32>
    %cst_82 = arith.constant 0.000000e+00 : f32
    %218 = vector.broadcast %cst_82 : f32 to vector<8x32xf32>
    %219 = arith.cmpf ogt, %217, %218 : vector<8x32xf32>
    %cst_83 = arith.constant 0.000000e+00 : f32
    %220 = vector.broadcast %cst_83 : f32 to vector<8x32xf32>
    %221 = arith.minimumf %217, %220 : vector<8x32xf32>
    %222 = math.exp %221 : vector<8x32xf32>
    %cst_84 = arith.constant 1.000000e+00 : f32
    %223 = vector.broadcast %cst_84 : f32 to vector<8x32xf32>
    %224 = arith.subf %222, %223 : vector<8x32xf32>
    %225 = arith.select %219, %217, %224 : vector<8x32xi1>, vector<8x32xf32>
    %c79 = arith.constant 79 : index
    %c0_85 = arith.constant 0 : index
    %226 = vector.load %arg2[%c79, %c0_85] : memref<81x192xf32, #tpu.memory_space<vmem>>, vector<1x32xf32>
    %cst_86 = arith.constant dense<0.000000e+00> : vector<1x8xf32>
    %227 = tpu.matmul %226, %225, %cst_86 {dimension_numbers = #tpu.dot_dimension_numbers<[1], [1], [0], [0], [0, 0, 1, 0], [], []>} : vector<1x32xf32>, vector<8x32xf32>, vector<1x8xf32> -> vector<1x8xf32>
    %c80_87 = arith.constant 80 : index
    %c0_88 = arith.constant 0 : index
    %228 = vector.load %arg2[%c80_87, %c0_88] : memref<81x192xf32, #tpu.memory_space<vmem>>, vector<1x1xf32>
    %229 = vector.broadcast %228 : vector<1x1xf32> to vector<1x8xf32>
    %230 = arith.addf %227, %229 : vector<1x8xf32>
    %cst_89 = arith.constant 0.000000e+00 : f32
    %231 = vector.broadcast %cst_89 : f32 to vector<1x8xf32>
    %232 = arith.subf %231, %230 : vector<1x8xf32>
    %233 = math.exp %232 : vector<1x8xf32>
    %cst_90 = arith.constant 1.000000e+00 : f32
    %234 = vector.broadcast %cst_90 : f32 to vector<1x8xf32>
    %235 = arith.addf %234, %233 : vector<1x8xf32>
    %cst_91 = arith.constant 1.000000e+00 : f32
    %236 = vector.broadcast %cst_91 : f32 to vector<1x8xf32>
    %237 = arith.divf %236, %235 : vector<1x8xf32>
    %c0_92 = arith.constant 0 : index
    %c0_93 = arith.constant 0 : index
    %238 = vector.load %arg4[%c0_92, %c0_93] : memref<1x8xf32, #tpu.memory_space<vmem>>, vector<1x8xf32>
    tpu.vector_store %arg4[%c0_92, %c0_93], %237 {strides = array<i32>} : memref<1x8xf32, #tpu.memory_space<vmem>>, vector<1x8xf32>,
    return
  }
}

</mosaic_0001>

<llo_original>
// kernel: tpu_custom_call.1
$region0: #{tpu_custom_call.1}
  #allocation0 [shape = 'u32[]', space=smem, size = 0x4, offset = 0x4, fixed_abs, tag = 'smem constant byte address 0x4 - core index']
  #allocation1 [shape = 'u32[144,128]{1,0:T(1,128)}', space=vmem, size = 0x12000, scoped, tag = 'internal scratch']
  %s0 = inlined_call_operand.vmem [shape: f32[16,12], index: 0, kind: input, shape index: {}]
  %s1 = inlined_call_operand.vmem [shape: s32[16,1], index: 1, kind: input, shape index: {}]
  %s2 = inlined_call_operand.vmem [shape: f32[81,192], index: 2, kind: input, shape index: {}]
  %s3 = inlined_call_operand.vmem [shape: f32[240,32], index: 3, kind: input, shape index: {}]
  %s4 = inlined_call_operand.hbm [shape: f32[1,8], index: 4, kind: output, shape index: {}]
  %s5 = sld [smem:[#allocation0]]
  $region26: #{tpu_custom_call.1} parent=0
    _
  %s7 = ssub.s32 1, %s5
  %s8 = scalar_select 0, %s7, %s5
  $region1: #{tpu_custom_call.1} parent=0
    #allocation2 [shape = 'u8[512]{0}', space=vmem, size = 0x400, scoped, tag = 'output window, operand 0, single buffered']
    #allocation3 [shape = 's32[1]{0}', space=sflag, size = 0x4, scoped, tag = 'scoped memory for tpu_custom_call.1']
    %9 = vsyncpa [#allocation3], 0
    // Predicated region
    $region2: #{tpu_custom_call.1} parent=1 // pred_check
      _
    $region3: #{tpu_custom_call.1} parent=1 // pred_check_branch
      %11 = sbr.rel (0) target = $region5
    $region4: #{tpu_custom_call.1} parent=1 // pred_region
      _
    $region5: #{tpu_custom_call.1} parent=1 // pred_fallthru
      _
    // Predicated region
    $region6: #{tpu_custom_call.1} parent=1 // pred_check
      _
    $region7: #{tpu_custom_call.1} parent=1 // pred_check_branch
      %13 = sbr.rel (0) target = $region9
    $region8: #{tpu_custom_call.1} parent=1 // pred_region
      _
    $region9: #{tpu_custom_call.1} parent=1 // pred_fallthru
      _
    // Predicated region
    $region10: #{tpu_custom_call.1} parent=1 // pred_check
      _
    $region11: #{tpu_custom_call.1} parent=1 // pred_check_branch
      %15 = sbr.rel (0) target = $region13
    $region12: #{tpu_custom_call.1} parent=1 // pred_region
      _
    $region13: #{tpu_custom_call.1} parent=1 // pred_fallthru
      _
    // Predicated region
    $region14: #{tpu_custom_call.1} parent=1 // pred_check
      _
    $region15: #{tpu_custom_call.1} parent=1 // pred_check_branch
      %17 = sbr.rel (0) target = $region17
    $region16: #{tpu_custom_call.1} parent=1 // pred_region
      _
    $region17: #{tpu_custom_call.1} parent=1 // pred_fallthru
      _
    %v18 = vld [vmem:[%s3] sm:$0xff]
    %v19 = vld [vmem:[%s3 + $0x8] sm:$0xf]
    %v20 = vld [vmem:[%s0] sm:$0xff]
    %v21 = vld [vmem:[%s0 + $0x8] sm:$0xff]
    %v22 = vld [vmem:[%s2 + $0x80] ss:$0 sm:$0xff]
    %vm23 = vcmask 97280
    %v25 = vsel %vm23, %v20, 0
    %v28 = vsel %vm23, %v21, 0
    %vm30 = vcmask 1043456
    %v32 = vsel %vm30, %v19, 0
    %34 = vmatprep.subr.mxu0 0.0
    %35 = vmatpush1.msra.mxu0 %v18
    %36 = vmatprep.subr.mxu0 0.0
    %37 = vmatpush1.msra.mxu0 %v32
    %38 = vmatprep.subr.mxu0 0.0
    %39 = vmatpush1.msra.mxu0 0.0
    %40 = vmatprep.subr.mxu0 0.0
    %41 = vmatpush1.msra.mxu0 0.0
    %42 = vmatprep.subr.mxu0 0.0
    %43 = vmatpush1.msra.mxu0 0.0
    %44 = vmatprep.subr.mxu0 0.0
    %45 = vmatpush1.msra.mxu0 0.0
    %46 = vmatprep.subr.mxu0 0.0
    %47 = vmatpush1.msra.mxu0 0.0
    %48 = vmatprep.subr.mxu0 0.0
    %49 = vmatpush1.msra.mxu0 0.0
    %50 = vmatprep.subr.mxu0 0.0
    %51 = vmatpush1.msra.mxu0 0.0
    %52 = vmatprep.subr.mxu0 0.0
    %53 = vmatpush1.msra.mxu0 0.0
    %54 = vmatprep.subr.mxu0 0.0
    %55 = vmatpush1.msra.mxu0 0.0
    %56 = vmatprep.subr.mxu0 0.0
    %57 = vmatpush1.msra.mxu0 0.0
    %58 = vmatprep.subr.mxu0 0.0
    %59 = vmatpush1.msra.mxu0 0.0
    %60 = vmatprep.subr.mxu0 0.0
    %61 = vmatpush1.msra.mxu0 0.0
    %62 = vmatprep.subr.mxu0 0.0
    %63 = vmatpush1.msra.mxu0 0.0
    %64 = vmatprep.subr.mxu0 0.0
    %65 = vmatpush1.msra.mxu0 0.0
    %66 = vmatprep.subr.mxu0 0.0
    %67 = vmatpush1.msra.mxu0 0.0
    %68 = vmatprep.subr.mxu0 0.0
    %69 = vmatpush1.msra.mxu0 0.0
    %70 = vmatprep.subr.mxu0 0.0
    %71 = vmatpush1.msra.mxu0 0.0
    %72 = vmatprep.subr.mxu0 0.0
    %73 = vmatpush1.msra.mxu0 0.0
    %74 = vmatprep.subr.mxu0 0.0
    %75 = vmatpush1.msra.mxu0 0.0
    %76 = vmatprep.subr.mxu0 0.0
    %77 = vmatpush1.msra.mxu0 0.0
    %78 = vmatprep.subr.mxu0 0.0
    %79 = vmatpush1.msra.mxu0 0.0
    %80 = vmatprep.subr.mxu0 0.0
    %81 = vmatpush1.msra.mxu0 0.0
    %82 = vmatprep.subr.mxu0 0.0
    %83 = vmatpush1.msra.mxu0 0.0
    %84 = vmatprep.subr.mxu0 0.0
    %85 = vmatpush1.msra.mxu0 0.0
    %86 = vmatprep.subr.mxu0 0.0
    %87 = vmatpush1.msra.mxu0 0.0
    %88 = vmatprep.subr.mxu0 0.0
    %89 = vmatpush1.msra.mxu0 0.0
    %90 = vmatprep.subr.mxu0 0.0
    %91 = vmatpush1.msra.mxu0 0.0
    %92 = vmatprep.subr.mxu0 0.0
    %93 = vmatpush1.msra.mxu0 0.0
    %94 = vmatprep.subr.mxu0 0.0
    %95 = vmatpush1.msra.mxu0 0.0
    %96 = vmatprep.subr.mxu0 0.0
    %97 = vmatpush1.msra.mxu0 0.0
    %98 = vmatprep.mubr.f32.mxu0 0.0
    %99 = vmatmul.mubr.f32.gmra.mrb[0].mxu0 %v25
    %v100 = vpop.f32.mrb[0].mxu0
    %v101 = vadd.f32 %v22, %v100
    %v102 = vpop.f32.mrb[0].mxu0
    %103 = vmatprep.mubr.f32.mxu0 0.0
    %104 = vmatmul.mubr.f32.gmra.mrb[0].mxu0 %v28
    %v105 = vpop.f32.mrb[0].mxu0
    %v106 = vadd.f32 %v22, %v105
    %v107 = vpop.f32.mrb[0].mxu0
    %108 = vdwg.mxu0
    %v109 = vld [vmem:[%s2 + $0x81] ss:$0 sm:$0xff]
    %v110 = vld [vmem:[%s2 + $0x82] ss:$0 sm:$0xff]
    %vm111 = vcmask 261120
    %v112 = vsel %vm111, %v101, 0.0
    %113 = vadd.xlane.f32.xlu0 %v112
    %v114 = vpop.xlane.xlu0 %113
    %v115 = vsel %vm111, %v106, 0.0
    %116 = vadd.xlane.f32.xlu0 %v115
    %v117 = vpop.xlane.xlu0 %116
    %v118 = vrcp.pop 32.0
    %v119 = vmul.f32 %v114, %v118
    %v120 = vmul.f32 %v117, %v118
    %v121 = vsub.f32 %v101, %v119
    %v122 = vsub.f32 %v106, %v120
    %v123 = vmul.f32 %v121, %v121
    %v124 = vmul.f32 %v122, %v122
    %v125 = vsel %vm111, %v123, 0.0
    %126 = vadd.xlane.f32.xlu0 %v125
    %v127 = vpop.xlane.xlu0 %126
    %v128 = vsel %vm111, %v124, 0.0
    %129 = vadd.xlane.f32.xlu0 %v128
    %v130 = vpop.xlane.xlu0 %129
    %v131 = vmul.f32 %v127, %v118
    %v132 = vmul.f32 %v130, %v118
    %v133 = vadd.f32 %v131, 1e-05
    %v134 = vadd.f32 %v132, 1e-05
    %v135 = vrsqrt.pop %v133
    %v136 = vrsqrt.pop %v134
    %v137 = vmul.f32 %v121, %v135
    %v138 = vmul.f32 %v122, %v136
    %v139 = vmul.f32 %v137, %v109
    %v140 = vmul.f32 %v138, %v109
    %v141 = vadd.f32 %v139, %v110
    %v142 = vadd.f32 %v140, %v110
    %vm143 = vcmp.gt.f32.partialorder %v141, 0.0
    %vm144 = vcmp.gt.f32.partialorder %v142, 0.0
    %v145 = vmin.f32 %v141, 0.0
    %v146 = vmin.f32 %v142, 0.0
    %v147 = vmul.f32 %v145, 1.442695
    %v148 = vpow.pop %v147
    %v149 = vmul.f32 %v146, 1.442695
    %v150 = vpow.pop %v149
    %v151 = vsub.f32 %v148, 1.0
    %v152 = vsub.f32 %v150, 1.0
    %v153 = vsel %vm143, %v141, %v151
    %v154 = vsel %vm144, %v142, %v152
    %v155 = vld [vmem:[%s2] sm:$0xff]
    %v156 = vld [vmem:[%s2 + $0x8] sm:$0xff]
    %v157 = vld [vmem:[%s2 + $0x10] sm:$0xff]
    %v158 = vld [vmem:[%s2 + $0x18] sm:$0xff]
    %v159 = vld [vmem:[%s2 + $0x20] sm:$0xff]
    %v160 = vld [vmem:[%s2 + $0x28] sm:$0xff]
    %v161 = vld [vmem:[%s2 + $0x30] sm:$0xff]
    %v162 = vld [vmem:[%s2 + $0x38] sm:$0xff]
    %s163 = scalar_lea.vmem %s2, 131
    %v164 = vld [vmem:[%s163] ss:$8 sm:$0x3]
    %v166 = vlaneseq
    %v167 = vshrl.u32 %v166, 7
    %v168 = vsub.s32 0, %v167
    %v169 = vrot.slane %v164, %v168
    %v170 = vlaneseq
    %v171 = vshrl.u32 %v170, 7
    %v172 = vsub.s32 1, %v171
    %v173 = vrot.slane %v164, %v172
    %v177 = vsel %vm111, %v153, 0
    %v180 = vsel %vm111, %v154, 0
    %182 = vmatprep.subr.mxu0 %v156
    %183 = vmatpush1.msra.mxu0 %v155
    %184 = vmatprep.subr.mxu0 %v158
    %185 = vmatpush1.msra.mxu0 %v157
    %186 = vmatprep.subr.mxu0 %v160
    %187 = vmatpush1.msra.mxu0 %v159
    %188 = vmatprep.subr.mxu0 %v162
    %189 = vmatpush1.msra.mxu0 %v161
    %190 = vmatprep.subr.mxu0 0.0
    %191 = vmatpush1.msra.mxu0 0.0
    %192 = vmatprep.subr.mxu0 0.0
    %193 = vmatpush1.msra.mxu0 0.0
    %194 = vmatprep.subr.mxu0 0.0
    %195 = vmatpush1.msra.mxu0 0.0
    %196 = vmatprep.subr.mxu0 0.0
    %197 = vmatpush1.msra.mxu0 0.0
    %198 = vmatprep.subr.mxu0 0.0
    %199 = vmatpush1.msra.mxu0 0.0
    %200 = vmatprep.subr.mxu0 0.0
    %201 = vmatpush1.msra.mxu0 0.0
    %202 = vmatprep.subr.mxu0 0.0
    %203 = vmatpush1.msra.mxu0 0.0
    %204 = vmatprep.subr.mxu0 0.0
    %205 = vmatpush1.msra.mxu0 0.0
    %206 = vmatprep.subr.mxu0 0.0
    %207 = vmatpush1.msra.mxu0 0.0
    %208 = vmatprep.subr.mxu0 0.0
    %209 = vmatpush1.msra.mxu0 0.0
    %210 = vmatprep.subr.mxu0 0.0
    %211 = vmatpush1.msra.mxu0 0.0
    %212 = vmatprep.subr.mxu0 0.0
    %213 = vmatpush1.msra.mxu0 0.0
    %214 = vmatprep.subr.mxu0 0.0
    %215 = vmatpush1.msra.mxu0 0.0
    %216 = vmatprep.subr.mxu0 0.0
    %217 = vmatpush1.msra.mxu0 0.0
    %218 = vmatprep.subr.mxu0 0.0
    %219 = vmatpush1.msra.mxu0 0.0
    %220 = vmatprep.subr.mxu0 0.0
    %221 = vmatpush1.msra.mxu0 0.0
    %222 = vmatprep.subr.mxu0 0.0
    %223 = vmatpush1.msra.mxu0 0.0
    %224 = vmatprep.subr.mxu0 0.0
    %225 = vmatpush1.msra.mxu0 0.0
    %226 = vmatprep.subr.mxu0 0.0
    %227 = vmatpush1.msra.mxu0 0.0
    %228 = vmatprep.subr.mxu0 0.0
    %229 = vmatpush1.msra.mxu0 0.0
    %230 = vmatprep.subr.mxu0 0.0
    %231 = vmatpush1.msra.mxu0 0.0
    %232 = vmatprep.subr.mxu0 0.0
    %233 = vmatpush1.msra.mxu0 0.0
    %234 = vmatprep.subr.mxu0 0.0
    %235 = vmatpush1.msra.mxu0 0.0
    %236 = vmatprep.subr.mxu0 0.0
    %237 = vmatpush1.msra.mxu0 0.0
    %238 = vmatprep.subr.mxu0 0.0
    %239 = vmatpush1.msra.mxu0 0.0
    %240 = vmatprep.subr.mxu0 0.0
    %241 = vmatpush1.msra.mxu0 0.0
    %242 = vmatprep.subr.mxu0 0.0
    %243 = vmatpush1.msra.mxu0 0.0
    %244 = vmatprep.subr.mxu0 0.0
    %245 = vmatpush1.msra.mxu0 0.0
    %246 = vmatprep.mubr.f32.mxu0 0.0
    %247 = vmatmul.mubr.f32.gmra.mrb[0].mxu0 %v177
    %v248 = vpop.f32.mrb[0].mxu0
    %v249 = vadd.f32 %v169, %v248
    %v250 = vpop.f32.mrb[0].mxu0
    %v251 = vadd.f32 %v173, %v250
    %252 = vmatprep.mubr.f32.mxu0 0.0
    %253 = vmatmul.mubr.f32.gmra.mrb[0].mxu0 %v180
    %v254 = vpop.f32.mrb[0].mxu0
    %v255 = vadd.f32 %v169, %v254
    %v256 = vpop.f32.mrb[0].mxu0
    %v257 = vadd.f32 %v173, %v256
    %258 = vdwg.mxu0
    %261 = vrot.lane.b32.xlu0 %v249, 64
    %v262 = vpop.permute.xlu0 %261
    %263 = vrot.lane.b32.xlu0 %v255, 64
    %v264 = vpop.permute.xlu0 %263
    %v265 = vsel %vm111, %v249, 0
    %v267 = vsel %vm111, %v255, 0
    %v269 = vsel %vm111, %v262, 0
    %v271 = vsel %vm111, %v264, 0
    %273 = vmatprep.subr.mxu0 0.0
    %274 = vmatpush1.xpose.msra.mxu0 %v269
    %275 = vmatprep.subr.mxu0 0.0
    %276 = vmatpush1.xpose.msra.mxu0 %v271
    %277 = vmatprep.subr.mxu0 0.0
    %278 = vmatpush1.xpose.msra.mxu0 0.0
    %279 = vmatprep.subr.mxu0 0.0
    %280 = vmatpush1.xpose.msra.mxu0 0.0
    %281 = vmatprep.subr.mxu0 0.0
    %282 = vmatpush1.xpose.msra.mxu0 0.0
    %283 = vmatprep.subr.mxu0 0.0
    %284 = vmatpush1.xpose.msra.mxu0 0.0
    %285 = vmatprep.subr.mxu0 0.0
    %286 = vmatpush1.xpose.msra.mxu0 0.0
    %287 = vmatprep.subr.mxu0 0.0
    %288 = vmatpush1.xpose.msra.mxu0 0.0
    %289 = vmatprep.subr.mxu0 0.0
    %290 = vmatpush1.xpose.msra.mxu0 0.0
    %291 = vmatprep.subr.mxu0 0.0
    %292 = vmatpush1.xpose.msra.mxu0 0.0
    %293 = vmatprep.subr.mxu0 0.0
    %294 = vmatpush1.xpose.msra.mxu0 0.0
    %295 = vmatprep.subr.mxu0 0.0
    %296 = vmatpush1.xpose.msra.mxu0 0.0
    %297 = vmatprep.subr.mxu0 0.0
    %298 = vmatpush1.xpose.msra.mxu0 0.0
    %299 = vmatprep.subr.mxu0 0.0
    %300 = vmatpush1.xpose.msra.mxu0 0.0
    %301 = vmatprep.subr.mxu0 0.0
    %302 = vmatpush1.xpose.msra.mxu0 0.0
    %303 = vmatprep.subr.mxu0 0.0
    %304 = vmatpush1.xpose.msra.mxu0 0.0
    %305 = vmatprep.subr.mxu0 0.0
    %306 = vmatpush1.xpose.msra.mxu0 0.0
    %307 = vmatprep.subr.mxu0 0.0
    %308 = vmatpush1.xpose.msra.mxu0 0.0
    %309 = vmatprep.subr.mxu0 0.0
    %310 = vmatpush1.xpose.msra.mxu0 0.0
    %311 = vmatprep.subr.mxu0 0.0
    %312 = vmatpush1.xpose.msra.mxu0 0.0
    %313 = vmatprep.subr.mxu0 0.0
    %314 = vmatpush1.xpose.msra.mxu0 0.0
    %315 = vmatprep.subr.mxu0 0.0
    %316 = vmatpush1.xpose.msra.mxu0 0.0
    %317 = vmatprep.subr.mxu0 0.0
    %318 = vmatpush1.xpose.msra.mxu0 0.0
    %319 = vmatprep.subr.mxu0 0.0
    %320 = vmatpush1.xpose.msra.mxu0 0.0
    %321 = vmatprep.subr.mxu0 0.0
    %322 = vmatpush1.xpose.msra.mxu0 0.0
    %323 = vmatprep.subr.mxu0 0.0
    %324 = vmatpush1.xpose.msra.mxu0 0.0
    %325 = vmatprep.subr.mxu0 0.0
    %326 = vmatpush1.xpose.msra.mxu0 0.0
    %327 = vmatprep.subr.mxu0 0.0
    %328 = vmatpush1.xpose.msra.mxu0 0.0
    %329 = vmatprep.subr.mxu0 0.0
    %330 = vmatpush1.xpose.msra.mxu0 0.0
    %331 = vmatprep.subr.mxu0 0.0
    %332 = vmatpush1.xpose.msra.mxu0 0.0
    %333 = vmatprep.subr.mxu0 0.0
    %334 = vmatpush1.xpose.msra.mxu0 0.0
    %335 = vmatprep.subr.mxu0 0.0
    %336 = vmatpush1.xpose.msra.mxu0 0.0
    %337 = vmatprep.mubr.f32.mxu0 0.0
    %338 = vmatmul.mubr.f32.gmra.mrb[0].mxu0 %v265
    %v339 = vpop.f32.mrb[0].mxu0
    %v340 = vadd.f32 0.0, %v339
    %v341 = vpop.f32.mrb[0].mxu0
    %342 = vmatprep.mubr.f32.mxu0 0.0
    %343 = vmatmul.mubr.f32.gmra.mrb[0].mxu0 %v267
    %v344 = vpop.f32.mrb[0].mxu0
    %v345 = vadd.f32 0.0, %v344
    %v346 = vpop.f32.mrb[0].mxu0
    %347 = vdwg.mxu0
    %vm348 = vcmask 130048
    %v349 = vsel %vm348, %v340, -inf
    %350 = vmax.xlane.f32.xlu0 %v349
    %v351 = vpop.xlane.xlu0 %350
    %v352 = vsel %vm348, %v345, -inf
    %353 = vmax.xlane.f32.xlu0 %v352
    %v354 = vpop.xlane.xlu0 %353
    %v355 = vsub.f32 %v340, %v351
    %v356 = vsub.f32 %v345, %v354
    %v357 = vmul.f32 %v355, 1.442695
    %v358 = vpow.pop %v357
    %v359 = vmul.f32 %v356, 1.442695
    %v360 = vpow.pop %v359
    %v362 = vsel %vm348, %v358, 0
    %v365 = vsel %vm348, %v360, 0
    %367 = vmatprep.subr.mxu0 0.0
    %368 = vmatpush1.msra.mxu0 %v251
    %369 = vmatprep.subr.mxu0 0.0
    %370 = vmatpush1.msra.mxu0 %v257
    %371 = vmatprep.subr.mxu0 0.0
    %372 = vmatpush1.msra.mxu0 0.0
    %373 = vmatprep.subr.mxu0 0.0
    %374 = vmatpush1.msra.mxu0 0.0
    %375 = vmatprep.subr.mxu0 0.0
    %376 = vmatpush1.msra.mxu0 0.0
    %377 = vmatprep.subr.mxu0 0.0
    %378 = vmatpush1.msra.mxu0 0.0
    %379 = vmatprep.subr.mxu0 0.0
    %380 = vmatpush1.msra.mxu0 0.0
    %381 = vmatprep.subr.mxu0 0.0
    %382 = vmatpush1.msra.mxu0 0.0
    %383 = vmatprep.subr.mxu0 0.0
    %384 = vmatpush1.msra.mxu0 0.0
    %385 = vmatprep.subr.mxu0 0.0
    %386 = vmatpush1.msra.mxu0 0.0
    %387 = vmatprep.subr.mxu0 0.0
    %388 = vmatpush1.msra.mxu0 0.0
    %389 = vmatprep.subr.mxu0 0.0
    %390 = vmatpush1.msra.mxu0 0.0
    %391 = vmatprep.subr.mxu0 0.0
    %392 = vmatpush1.msra.mxu0 0.0
    %393 = vmatprep.subr.mxu0 0.0
    %394 = vmatpush1.msra.mxu0 0.0
    %395 = vmatprep.subr.mxu0 0.0
    %396 = vmatpush1.msra.mxu0 0.0
    %397 = vmatprep.subr.mxu0 0.0
    %398 = vmatpush1.msra.mxu0 0.0
    %399 = vmatprep.subr.mxu0 0.0
    %400 = vmatpush1.msra.mxu0 0.0
    %401 = vmatprep.subr.mxu0 0.0
    %402 = vmatpush1.msra.mxu0 0.0
    %403 = vmatprep.subr.mxu0 0.0
    %404 = vmatpush1.msra.mxu0 0.0
    %405 = vmatprep.subr.mxu0 0.0
    %406 = vmatpush1.msra.mxu0 0.0
    %407 = vmatprep.subr.mxu0 0.0
    %408 = vmatpush1.msra.mxu0 0.0
    %409 = vmatprep.subr.mxu0 0.0
    %410 = vmatpush1.msra.mxu0 0.0
    %411 = vmatprep.subr.mxu0 0.0
    %412 = vmatpush1.msra.mxu0 0.0
    %413 = vmatprep.subr.mxu0 0.0
    %414 = vmatpush1.msra.mxu0 0.0
    %415 = vmatprep.subr.mxu0 0.0
    %416 = vmatpush1.msra.mxu0 0.0
    %417 = vmatprep.subr.mxu0 0.0
    %418 = vmatpush1.msra.mxu0 0.0
    %419 = vmatprep.subr.mxu0 0.0
    %420 = vmatpush1.msra.mxu0 0.0
    %421 = vmatprep.subr.mxu0 0.0
    %422 = vmatpush1.msra.mxu0 0.0
    %423 = vmatprep.subr.mxu0 0.0
    %424 = vmatpush1.msra.mxu0 0.0
    %425 = vmatprep.subr.mxu0 0.0
    %426 = vmatpush1.msra.mxu0 0.0
    %427 = vmatprep.subr.mxu0 0.0
    %428 = vmatpush1.msra.mxu0 0.0
    %429 = vmatprep.subr.mxu0 0.0
    %430 = vmatpush1.msra.mxu0 0.0
    %431 = vmatprep.mubr.f32.mxu0 0.0
    %432 = vmatmul.mubr.f32.gmra.mrb[0].mxu0 %v362
    %v433 = vpop.f32.mrb[0].mxu0
    %v434 = vadd.f32 0.0, %v433
    %v435 = vpop.f32.mrb[0].mxu0
    %436 = vmatprep.mubr.f32.mxu0 0.0
    %437 = vmatmul.mubr.f32.gmra.mrb[0].mxu0 %v365
    %v438 = vpop.f32.mrb[0].mxu0
    %v439 = vadd.f32 0.0, %v438
    %v440 = vpop.f32.mrb[0].mxu0
    %441 = vdwg.mxu0
    %v442 = vsel %vm348, %v358, 0.0
    %443 = vadd.xlane.f32.xlu0 %v442
    %v444 = vpop.xlane.xlu0 %443
    %v445 = vsel %vm348, %v360, 0.0
    %446 = vadd.xlane.f32.xlu0 %v445
    %v447 = vpop.xlane.xlu0 %446
    %v448 = vrcp.pop %v444
    %v449 = vmul.f32 %v434, %v448
    %v450 = vrcp.pop %v447
    %v451 = vmul.f32 %v439, %v450
    %v452 = vld [vmem:[%s3 + $0x10] sm:$0xff]
    %v453 = vld [vmem:[%s3 + $0x18] sm:$0xff]
    %v454 = vld [vmem:[%s3 + $0x20] sm:$0xff]
    %v455 = vld [vmem:[%s3 + $0x28] sm:$0xff]
    %456 = vrot.lane.b32.xlu0 %v249, 96
    %v457 = vpop.permute.xlu0 %456
    %458 = vrot.lane.b32.xlu0 %v255, 96
    %v459 = vpop.permute.xlu0 %458
    %460 = vrot.lane.b32.xlu0 %v249, 32
    %v461 = vpop.permute.xlu0 %460
    %462 = vrot.lane.b32.xlu0 %v255, 32
    %v463 = vpop.permute.xlu0 %462
    %v464 = vsel %vm111, %v457, 0
    %v466 = vsel %vm111, %v459, 0
    %v468 = vsel %vm111, %v461, 0
    %v470 = vsel %vm111, %v463, 0
    %472 = vmatprep.subr.mxu0 0.0
    %473 = vmatpush1.xpose.msra.mxu0 %v468
    %474 = vmatprep.subr.mxu0 0.0
    %475 = vmatpush1.xpose.msra.mxu0 %v470
    %476 = vmatprep.subr.mxu0 0.0
    %477 = vmatpush1.xpose.msra.mxu0 0.0
    %478 = vmatprep.subr.mxu0 0.0
    %479 = vmatpush1.xpose.msra.mxu0 0.0
    %480 = vmatprep.subr.mxu0 0.0
    %481 = vmatpush1.xpose.msra.mxu0 0.0
    %482 = vmatprep.subr.mxu0 0.0
    %483 = vmatpush1.xpose.msra.mxu0 0.0
    %484 = vmatprep.subr.mxu0 0.0
    %485 = vmatpush1.xpose.msra.mxu0 0.0
    %486 = vmatprep.subr.mxu0 0.0
    %487 = vmatpush1.xpose.msra.mxu0 0.0
    %488 = vmatprep.subr.mxu0 0.0
    %489 = vmatpush1.xpose.msra.mxu0 0.0
    %490 = vmatprep.subr.mxu0 0.0
    %491 = vmatpush1.xpose.msra.mxu0 0.0
    %492 = vmatprep.subr.mxu0 0.0
    %493 = vmatpush1.xpose.msra.mxu0 0.0
    %494 = vmatprep.subr.mxu0 0.0
    %495 = vmatpush1.xpose.msra.mxu0 0.0
    %496 = vmatprep.subr.mxu0 0.0
    %497 = vmatpush1.xpose.msra.mxu0 0.0
    %498 = vmatprep.subr.mxu0 0.0
    %499 = vmatpush1.xpose.msra.mxu0 0.0
    %500 = vmatprep.subr.mxu0 0.0
    %501 = vmatpush1.xpose.msra.mxu0 0.0
    %502 = vmatprep.subr.mxu0 0.0
    %503 = vmatpush1.xpose.msra.mxu0 0.0
    %504 = vmatprep.subr.mxu0 0.0
    %505 = vmatpush1.xpose.msra.mxu0 0.0
    %506 = vmatprep.subr.mxu0 0.0
    %507 = vmatpush1.xpose.msra.mxu0 0.0
    %508 = vmatprep.subr.mxu0 0.0
    %509 = vmatpush1.xpose.msra.mxu0 0.0
    %510 = vmatprep.subr.mxu0 0.0
    %511 = vmatpush1.xpose.msra.mxu0 0.0
    %512 = vmatprep.subr.mxu0 0.0
    %513 = vmatpush1.xpose.msra.mxu0 0.0
    %514 = vmatprep.subr.mxu0 0.0
    %515 = vmatpush1.xpose.msra.mxu0 0.0
    %516 = vmatprep.subr.mxu0 0.0
    %517 = vmatpush1.xpose.msra.mxu0 0.0
    %518 = vmatprep.subr.mxu0 0.0
    %519 = vmatpush1.xpose.msra.mxu0 0.0
    %520 = vmatprep.subr.mxu0 0.0
    %521 = vmatpush1.xpose.msra.mxu0 0.0
    %522 = vmatprep.subr.mxu0 0.0
    %523 = vmatpush1.xpose.msra.mxu0 0.0
    %524 = vmatprep.subr.mxu0 0.0
    %525 = vmatpush1.xpose.msra.mxu0 0.0
    %526 = vmatprep.subr.mxu0 0.0
    %527 = vmatpush1.xpose.msra.mxu0 0.0
    %528 = vmatprep.subr.mxu0 0.0
    %529 = vmatpush1.xpose.msra.mxu0 0.0
    %530 = vmatprep.subr.mxu0 0.0
    %531 = vmatpush1.xpose.msra.mxu0 0.0
    %532 = vmatprep.subr.mxu0 0.0
    %533 = vmatpush1.xpose.msra.mxu0 0.0
    %534 = vmatprep.subr.mxu0 0.0
    %535 = vmatpush1.xpose.msra.mxu0 0.0
    %536 = vmatprep.mubr.f32.mxu0 0.0
    %537 = vmatmul.mubr.f32.gmra.mrb[0].mxu0 %v464
    %v538 = vpop.f32.mrb[0].mxu0
    %v539 = vadd.f32 0.0, %v538
    %v540 = vpop.f32.mrb[0].mxu0
    %541 = vmatprep.mubr.f32.mxu0 0.0
    %542 = vmatmul.mubr.f32.gmra.mrb[0].mxu0 %v466
    %v543 = vpop.f32.mrb[0].mxu0
    %v544 = vadd.f32 0.0, %v543
    %v545 = vpop.f32.mrb[0].mxu0
    %546 = vdwg.mxu0
    %v547 = vsel %vm348, %v539, -inf
    %548 = vmax.xlane.f32.xlu0 %v547
    %v549 = vpop.xlane.xlu0 %548
    %v550 = vsel %vm348, %v544, -inf
    %551 = vmax.xlane.f32.xlu0 %v550
    %v552 = vpop.xlane.xlu0 %551
    %v553 = vsub.f32 %v539, %v549
    %v554 = vsub.f32 %v544, %v552
    %v555 = vmul.f32 %v553, 1.442695
    %v556 = vpow.pop %v555
    %v557 = vmul.f32 %v554, 1.442695
    %v558 = vpow.pop %v557
    %561 = vrot.lane.b32.xlu0 %v251, 96
    %v562 = vpop.permute.xlu0 %561
    %563 = vrot.lane.b32.xlu0 %v257, 96
    %v564 = vpop.permute.xlu0 %563
    %v568 = vsel %vm348, %v556, 0
    %v571 = vsel %vm348, %v558, 0
    %573 = vmatprep.subr.mxu0 0.0
    %574 = vmatpush1.msra.mxu0 %v562
    %575 = vmatprep.subr.mxu0 0.0
    %576 = vmatpush1.msra.mxu0 %v564
    %577 = vmatprep.subr.mxu0 0.0
    %578 = vmatpush1.msra.mxu0 0.0
    %579 = vmatprep.subr.mxu0 0.0
    %580 = vmatpush1.msra.mxu0 0.0
    %581 = vmatprep.subr.mxu0 0.0
    %582 = vmatpush1.msra.mxu0 0.0
    %583 = vmatprep.subr.mxu0 0.0
    %584 = vmatpush1.msra.mxu0 0.0
    %585 = vmatprep.subr.mxu0 0.0
    %586 = vmatpush1.msra.mxu0 0.0
    %587 = vmatprep.subr.mxu0 0.0
    %588 = vmatpush1.msra.mxu0 0.0
    %589 = vmatprep.subr.mxu0 0.0
    %590 = vmatpush1.msra.mxu0 0.0
    %591 = vmatprep.subr.mxu0 0.0
    %592 = vmatpush1.msra.mxu0 0.0
    %593 = vmatprep.subr.mxu0 0.0
    %594 = vmatpush1.msra.mxu0 0.0
    %595 = vmatprep.subr.mxu0 0.0
    %596 = vmatpush1.msra.mxu0 0.0
    %597 = vmatprep.subr.mxu0 0.0
    %598 = vmatpush1.msra.mxu0 0.0
    %599 = vmatprep.subr.mxu0 0.0
    %600 = vmatpush1.msra.mxu0 0.0
    %601 = vmatprep.subr.mxu0 0.0
    %602 = vmatpush1.msra.mxu0 0.0
    %603 = vmatprep.subr.mxu0 0.0
    %604 = vmatpush1.msra.mxu0 0.0
    %605 = vmatprep.subr.mxu0 0.0
    %606 = vmatpush1.msra.mxu0 0.0
    %607 = vmatprep.subr.mxu0 0.0
    %608 = vmatpush1.msra.mxu0 0.0
    %609 = vmatprep.subr.mxu0 0.0
    %610 = vmatpush1.msra.mxu0 0.0
    %611 = vmatprep.subr.mxu0 0.0
    %612 = vmatpush1.msra.mxu0 0.0
    %613 = vmatprep.subr.mxu0 0.0
    %614 = vmatpush1.msra.mxu0 0.0
    %615 = vmatprep.subr.mxu0 0.0
    %616 = vmatpush1.msra.mxu0 0.0
    %617 = vmatprep.subr.mxu0 0.0
    %618 = vmatpush1.msra.mxu0 0.0
    %619 = vmatprep.subr.mxu0 0.0
    %620 = vmatpush1.msra.mxu0 0.0
    %621 = vmatprep.subr.mxu0 0.0
    %622 = vmatpush1.msra.mxu0 0.0
    %623 = vmatprep.subr.mxu0 0.0
    %624 = vmatpush1.msra.mxu0 0.0
    %625 = vmatprep.subr.mxu0 0.0
    %626 = vmatpush1.msra.mxu0 0.0
    %627 = vmatprep.subr.mxu0 0.0
    %628 = vmatpush1.msra.mxu0 0.0
    %629 = vmatprep.subr.mxu0 0.0
    %630 = vmatpush1.msra.mxu0 0.0
    %631 = vmatprep.subr.mxu0 0.0
    %632 = vmatpush1.msra.mxu0 0.0
    %633 = vmatprep.subr.mxu0 0.0
    %634 = vmatpush1.msra.mxu0 0.0
    %635 = vmatprep.subr.mxu0 0.0
    %636 = vmatpush1.msra.mxu0 0.0
    %637 = vmatprep.mubr.f32.mxu0 0.0
    %638 = vmatmul.mubr.f32.gmra.mrb[0].mxu0 %v568
    %v639 = vpop.f32.mrb[0].mxu0
    %v640 = vadd.f32 0.0, %v639
    %v641 = vpop.f32.mrb[0].mxu0
    %642 = vmatprep.mubr.f32.mxu0 0.0
    %643 = vmatmul.mubr.f32.gmra.mrb[0].mxu0 %v571
    %v644 = vpop.f32.mrb[0].mxu0
    %v645 = vadd.f32 0.0, %v644
    %v646 = vpop.f32.mrb[0].mxu0
    %647 = vdwg.mxu0
    %v648 = vsel %vm348, %v556, 0.0
    %649 = vadd.xlane.f32.xlu0 %v648
    %v650 = vpop.xlane.xlu0 %649
    %v651 = vsel %vm348, %v558, 0.0
    %652 = vadd.xlane.f32.xlu0 %v651
    %v653 = vpop.xlane.xlu0 %652
    %v654 = vrcp.pop %v650
    %v655 = vmul.f32 %v640, %v654
    %v656 = vrcp.pop %v653
    %v657 = vmul.f32 %v645, %v656
    %v658 = vld [vmem:[%s3 + $0x30] sm:$0xff]
    %v659 = vld [vmem:[%s3 + $0x38] sm:$0xff]
    %v660 = vld [vmem:[%s3 + $0x40] sm:$0xff]
    %v661 = vld [vmem:[%s3 + $0x48] sm:$0xff]
    %v663 = vsel %vm111, %v655, 0
    %v666 = vsel %vm111, %v657, 0
    %668 = vmatprep.subr.mxu0 0.0
    %669 = vmatpush1.msra.mxu0 %v658
    %670 = vmatprep.subr.mxu0 0.0
    %671 = vmatpush1.msra.mxu0 %v659
    %672 = vmatprep.subr.mxu0 0.0
    %673 = vmatpush1.msra.mxu0 %v660
    %674 = vmatprep.subr.mxu0 0.0
    %675 = vmatpush1.msra.mxu0 %v661
    %676 = vmatprep.subr.mxu0 0.0
    %677 = vmatpush1.msra.mxu0 0.0
    %678 = vmatprep.subr.mxu0 0.0
    %679 = vmatpush1.msra.mxu0 0.0
    %680 = vmatprep.subr.mxu0 0.0
    %681 = vmatpush1.msra.mxu0 0.0
    %682 = vmatprep.subr.mxu0 0.0
    %683 = vmatpush1.msra.mxu0 0.0
    %684 = vmatprep.subr.mxu0 0.0
    %685 = vmatpush1.msra.mxu0 0.0
    %686 = vmatprep.subr.mxu0 0.0
    %687 = vmatpush1.msra.mxu0 0.0
    %688 = vmatprep.subr.mxu0 0.0
    %689 = vmatpush1.msra.mxu0 0.0
    %690 = vmatprep.subr.mxu0 0.0
    %691 = vmatpush1.msra.mxu0 0.0
    %692 = vmatprep.subr.mxu0 0.0
    %693 = vmatpush1.msra.mxu0 0.0
    %694 = vmatprep.subr.mxu0 0.0
    %695 = vmatpush1.msra.mxu0 0.0
    %696 = vmatprep.subr.mxu0 0.0
    %697 = vmatpush1.msra.mxu0 0.0
    %698 = vmatprep.subr.mxu0 0.0
    %699 = vmatpush1.msra.mxu0 0.0
    %700 = vmatprep.subr.mxu0 0.0
    %701 = vmatpush1.msra.mxu0 0.0
    %702 = vmatprep.subr.mxu0 0.0
    %703 = vmatpush1.msra.mxu0 0.0
    %704 = vmatprep.subr.mxu0 0.0
    %705 = vmatpush1.msra.mxu0 0.0
    %706 = vmatprep.subr.mxu0 0.0
    %707 = vmatpush1.msra.mxu0 0.0
    %708 = vmatprep.subr.mxu0 0.0
    %709 = vmatpush1.msra.mxu0 0.0
    %710 = vmatprep.subr.mxu0 0.0
    %711 = vmatpush1.msra.mxu0 0.0
    %712 = vmatprep.subr.mxu0 0.0
    %713 = vmatpush1.msra.mxu0 0.0
    %714 = vmatprep.subr.mxu0 0.0
    %715 = vmatpush1.msra.mxu0 0.0
    %716 = vmatprep.subr.mxu0 0.0
    %717 = vmatpush1.msra.mxu0 0.0
    %718 = vmatprep.subr.mxu0 0.0
    %719 = vmatpush1.msra.mxu0 0.0
    %720 = vmatprep.subr.mxu0 0.0
    %721 = vmatpush1.msra.mxu0 0.0
    %722 = vmatprep.subr.mxu0 0.0
    %723 = vmatpush1.msra.mxu0 0.0
    %724 = vmatprep.subr.mxu0 0.0
    %725 = vmatpush1.msra.mxu0 0.0
    %726 = vmatprep.subr.mxu0 0.0
    %727 = vmatpush1.msra.mxu0 0.0
    %728 = vmatprep.subr.mxu0 0.0
    %729 = vmatpush1.msra.mxu0 0.0
    %730 = vmatprep.subr.mxu0 0.0
    %731 = vmatpush1.msra.mxu0 0.0
    %732 = vmatprep.mubr.f32.mxu0 0.0
    %733 = vmatmul.mubr.f32.gmra.mrb[0].mxu0 %v663
    %v734 = vpop.f32.mrb[0].mxu0
    %v735 = vadd.f32 0.0, %v734
    %v736 = vpop.f32.mrb[0].mxu0
    %737 = vmatprep.mubr.f32.mxu0 0.0
    %738 = vmatmul.mubr.f32.gmra.mrb[0].mxu0 %v666
    %v739 = vpop.f32.mrb[0].mxu0
    %v740 = vadd.f32 0.0, %v739
    %v741 = vpop.f32.mrb[0].mxu0
    %742 = vdwg.mxu0
    %v744 = vsel %vm111, %v449, 0
    %v747 = vsel %vm111, %v451, 0
    %749 = vmatprep.subr.mxu0 0.0
    %750 = vmatpush1.msra.mxu0 %v452
    %751 = vmatprep.subr.mxu0 0.0
    %752 = vmatpush1.msra.mxu0 %v453
    %753 = vmatprep.subr.mxu0 0.0
    %754 = vmatpush1.msra.mxu0 %v454
    %755 = vmatprep.subr.mxu0 0.0
    %756 = vmatpush1.msra.mxu0 %v455
    %757 = vmatprep.subr.mxu0 0.0
    %758 = vmatpush1.msra.mxu0 0.0
    %759 = vmatprep.subr.mxu0 0.0
    %760 = vmatpush1.msra.mxu0 0.0
    %761 = vmatprep.subr.mxu0 0.0
    %762 = vmatpush1.msra.mxu0 0.0
    %763 = vmatprep.subr.mxu0 0.0
    %764 = vmatpush1.msra.mxu0 0.0
    %765 = vmatprep.subr.mxu0 0.0
    %766 = vmatpush1.msra.mxu0 0.0
    %767 = vmatprep.subr.mxu0 0.0
    %768 = vmatpush1.msra.mxu0 0.0
    %769 = vmatprep.subr.mxu0 0.0
    %770 = vmatpush1.msra.mxu0 0.0
    %771 = vmatprep.subr.mxu0 0.0
    %772 = vmatpush1.msra.mxu0 0.0
    %773 = vmatprep.subr.mxu0 0.0
    %774 = vmatpush1.msra.mxu0 0.0
    %775 = vmatprep.subr.mxu0 0.0
    %776 = vmatpush1.msra.mxu0 0.0
    %777 = vmatprep.subr.mxu0 0.0
    %778 = vmatpush1.msra.mxu0 0.0
    %779 = vmatprep.subr.mxu0 0.0
    %780 = vmatpush1.msra.mxu0 0.0
    %781 = vmatprep.subr.mxu0 0.0
    %782 = vmatpush1.msra.mxu0 0.0
    %783 = vmatprep.subr.mxu0 0.0
    %784 = vmatpush1.msra.mxu0 0.0
    %785 = vmatprep.subr.mxu0 0.0
    %786 = vmatpush1.msra.mxu0 0.0
    %787 = vmatprep.subr.mxu0 0.0
    %788 = vmatpush1.msra.mxu0 0.0
    %789 = vmatprep.subr.mxu0 0.0
    %790 = vmatpush1.msra.mxu0 0.0
    %791 = vmatprep.subr.mxu0 0.0
    %792 = vmatpush1.msra.mxu0 0.0
    %793 = vmatprep.subr.mxu0 0.0
    %794 = vmatpush1.msra.mxu0 0.0
    %795 = vmatprep.subr.mxu0 0.0
    %796 = vmatpush1.msra.mxu0 0.0
    %797 = vmatprep.subr.mxu0 0.0
    %798 = vmatpush1.msra.mxu0 0.0
    %799 = vmatprep.subr.mxu0 0.0
    %800 = vmatpush1.msra.mxu0 0.0
    %801 = vmatprep.subr.mxu0 0.0
    %802 = vmatpush1.msra.mxu0 0.0
    %803 = vmatprep.subr.mxu0 0.0
    %804 = vmatpush1.msra.mxu0 0.0
    %805 = vmatprep.subr.mxu0 0.0
    %806 = vmatpush1.msra.mxu0 0.0
    %807 = vmatprep.subr.mxu0 0.0
    %808 = vmatpush1.msra.mxu0 0.0
    %809 = vmatprep.subr.mxu0 0.0
    %810 = vmatpush1.msra.mxu0 0.0
    %811 = vmatprep.subr.mxu0 0.0
    %812 = vmatpush1.msra.mxu0 0.0
    %813 = vmatprep.mubr.f32.mxu0 0.0
    %814 = vmatmul.mubr.f32.gmra.mrb[0].mxu0 %v744
    %v815 = vpop.f32.mrb[0].mxu0
    %v816 = vadd.f32 %v735, %v815
    %v817 = vpop.f32.mrb[0].mxu0
    %818 = vmatprep.mubr.f32.mxu0 0.0
    %819 = vmatmul.mubr.f32.gmra.mrb[0].mxu0 %v747
    %v820 = vpop.f32.mrb[0].mxu0
    %v821 = vadd.f32 %v740, %v820
    %v822 = vpop.f32.mrb[0].mxu0
    %823 = vdwg.mxu0
    %v824 = vld [vmem:[%s2 + $0x84] ss:$0 sm:$0xff]
    %v825 = vadd.f32 %v816, %v824
    %v826 = vadd.f32 %v821, %v824
    %v827 = vadd.f32 %v825, %v153
    %v828 = vadd.f32 %v826, %v154
    %v829 = vld [vmem:[%s2 + $0x85] ss:$0 sm:$0xff]
    %v830 = vld [vmem:[%s2 + $0x86] ss:$0 sm:$0xff]
    %v831 = vsel %vm111, %v827, 0.0
    %832 = vadd.xlane.f32.xlu0 %v831
    %v833 = vpop.xlane.xlu0 %832
    %v834 = vsel %vm111, %v828, 0.0
    %835 = vadd.xlane.f32.xlu0 %v834
    %v836 = vpop.xlane.xlu0 %835
    %v837 = vmul.f32 %v833, %v118
    %v838 = vmul.f32 %v836, %v118
    %v839 = vsub.f32 %v827, %v837
    %v840 = vsub.f32 %v828, %v838
    %v841 = vmul.f32 %v839, %v839
    %v842 = vmul.f32 %v840, %v840
    %v843 = vsel %vm111, %v841, 0.0
    %844 = vadd.xlane.f32.xlu0 %v843
    %v845 = vpop.xlane.xlu0 %844
    %v846 = vsel %vm111, %v842, 0.0
    %847 = vadd.xlane.f32.xlu0 %v846
    %v848 = vpop.xlane.xlu0 %847
    %v849 = vmul.f32 %v845, %v118
    %v850 = vmul.f32 %v848, %v118
    %v851 = vadd.f32 %v849, 1e-05
    %v852 = vadd.f32 %v850, 1e-05
    %v853 = vrsqrt.pop %v851
    %v854 = vrsqrt.pop %v852
    %v855 = vmul.f32 %v839, %v853
    %v856 = vmul.f32 %v840, %v854
    %v857 = vmul.f32 %v855, %v829
    %v858 = vmul.f32 %v856, %v829
    %v859 = vadd.f32 %v857, %v830
    %v860 = vadd.f32 %v858, %v830
    %vm861 = vcmp.gt.f32.partialorder %v859, 0.0
    %vm862 = vcmp.gt.f32.partialorder %v860, 0.0
    %v863 = vmin.f32 %v859, 0.0
    %v864 = vmin.f32 %v860, 0.0
    %v865 = vmul.f32 %v863, 1.442695
    %v866 = vpow.pop %v865
    %v867 = vmul.f32 %v864, 1.442695
    %v868 = vpow.pop %v867
    %v869 = vsub.f32 %v866, 1.0
    %v870 = vsub.f32 %v868, 1.0
    %v871 = vsel %vm861, %v859, %v869
    %v872 = vsel %vm862, %v860, %v870
    %v873 = vld [vmem:[%s2 + $0x40] sm:$0xff]
    %v874 = vld [vmem:[%s2 + $0x48] sm:$0xff]
    %v875 = vld [vmem:[%s2 + $0x50] sm:$0xff]
    %v876 = vld [vmem:[%s2 + $0x58] sm:$0xff]
    %v877 = vld [vmem:[%s2 + $0x60] sm:$0xff]
    %v878 = vld [vmem:[%s2 + $0x68] sm:$0xff]
    %v879 = vld [vmem:[%s2 + $0x70] sm:$0xff]
    %v880 = vld [vmem:[%s2 + $0x78] sm:$0xff]
    %s881 = scalar_lea.vmem %s2, 135
    %v882 = vld [vmem:[%s881] ss:$8 sm:$0x3]
    %v884 = vlaneseq
    %v885 = vshrl.u32 %v884, 7
    %v886 = vsub.s32 0, %v885
    %v887 = vrot.slane %v882, %v886
    %v888 = vlaneseq
    %v889 = vshrl.u32 %v888, 7
    %v890 = vsub.s32 1, %v889
    %v891 = vrot.slane %v882, %v890
    %v895 = vsel %vm111, %v871, 0
    %v898 = vsel %vm111, %v872, 0
    %900 = vmatprep.subr.mxu0 %v874
    %901 = vmatpush1.msra.mxu0 %v873
    %902 = vmatprep.subr.mxu0 %v876
    %903 = vmatpush1.msra.mxu0 %v875
    %904 = vmatprep.subr.mxu0 %v878
    %905 = vmatpush1.msra.mxu0 %v877
    %906 = vmatprep.subr.mxu0 %v880
    %907 = vmatpush1.msra.mxu0 %v879
    %908 = vmatprep.subr.mxu0 0.0
    %909 = vmatpush1.msra.mxu0 0.0
    %910 = vmatprep.subr.mxu0 0.0
    %911 = vmatpush1.msra.mxu0 0.0
    %912 = vmatprep.subr.mxu0 0.0
    %913 = vmatpush1.msra.mxu0 0.0
    %914 = vmatprep.subr.mxu0 0.0
    %915 = vmatpush1.msra.mxu0 0.0
    %916 = vmatprep.subr.mxu0 0.0
    %917 = vmatpush1.msra.mxu0 0.0
    %918 = vmatprep.subr.mxu0 0.0
    %919 = vmatpush1.msra.mxu0 0.0
    %920 = vmatprep.subr.mxu0 0.0
    %921 = vmatpush1.msra.mxu0 0.0
    %922 = vmatprep.subr.mxu0 0.0
    %923 = vmatpush1.msra.mxu0 0.0
    %924 = vmatprep.subr.mxu0 0.0
    %925 = vmatpush1.msra.mxu0 0.0
    %926 = vmatprep.subr.mxu0 0.0
    %927 = vmatpush1.msra.mxu0 0.0
    %928 = vmatprep.subr.mxu0 0.0
    %929 = vmatpush1.msra.mxu0 0.0
    %930 = vmatprep.subr.mxu0 0.0
    %931 = vmatpush1.msra.mxu0 0.0
    %932 = vmatprep.subr.mxu0 0.0
    %933 = vmatpush1.msra.mxu0 0.0
    %934 = vmatprep.subr.mxu0 0.0
    %935 = vmatpush1.msra.mxu0 0.0
    %936 = vmatprep.subr.mxu0 0.0
    %937 = vmatpush1.msra.mxu0 0.0
    %938 = vmatprep.subr.mxu0 0.0
    %939 = vmatpush1.msra.mxu0 0.0
    %940 = vmatprep.subr.mxu0 0.0
    %941 = vmatpush1.msra.mxu0 0.0
    %942 = vmatprep.subr.mxu0 0.0
    %943 = vmatpush1.msra.mxu0 0.0
    %944 = vmatprep.subr.mxu0 0.0
    %945 = vmatpush1.msra.mxu0 0.0
    %946 = vmatprep.subr.mxu0 0.0
    %947 = vmatpush1.msra.mxu0 0.0
    %948 = vmatprep.subr.mxu0 0.0
    %949 = vmatpush1.msra.mxu0 0.0
    %950 = vmatprep.subr.mxu0 0.0
    %951 = vmatpush1.msra.mxu0 0.0
    %952 = vmatprep.subr.mxu0 0.0
    %953 = vmatpush1.msra.mxu0 0.0
    %954 = vmatprep.subr.mxu0 0.0
    %955 = vmatpush1.msra.mxu0 0.0
    %956 = vmatprep.subr.mxu0 0.0
    %957 = vmatpush1.msra.mxu0 0.0
    %958 = vmatprep.subr.mxu0 0.0
    %959 = vmatpush1.msra.mxu0 0.0
    %960 = vmatprep.subr.mxu0 0.0
    %961 = vmatpush1.msra.mxu0 0.0
    %962 = vmatprep.subr.mxu0 0.0
    %963 = vmatpush1.msra.mxu0 0.0
    %964 = vmatprep.mubr.f32.mxu0 0.0
    %965 = vmatmul.mubr.f32.gmra.mrb[0].mxu0 %v895
    %v966 = vpop.f32.mrb[0].mxu0
    %v967 = vadd.f32 %v887, %v966
    %v968 = vpop.f32.mrb[0].mxu0
    %v969 = vadd.f32 %v891, %v968
    %970 = vmatprep.mubr.f32.mxu0 0.0
    %971 = vmatmul.mubr.f32.gmra.mrb[0].mxu0 %v898
    %v972 = vpop.f32.mrb[0].mxu0
    %v973 = vadd.f32 %v887, %v972
    %v974 = vpop.f32.mrb[0].mxu0
    %v975 = vadd.f32 %v891, %v974
    %976 = vdwg.mxu0
    %979 = vrot.lane.b32.xlu0 %v967, 64
    %v980 = vpop.permute.xlu0 %979
    %981 = vrot.lane.b32.xlu0 %v973, 64
    %v982 = vpop.permute.xlu0 %981
    %v983 = vsel %vm111, %v967, 0
    %v985 = vsel %vm111, %v973, 0
    %v987 = vsel %vm111, %v980, 0
    %v989 = vsel %vm111, %v982, 0
    %991 = vmatprep.subr.mxu0 0.0
    %992 = vmatpush1.xpose.msra.mxu0 %v987
    %993 = vmatprep.subr.mxu0 0.0
    %994 = vmatpush1.xpose.msra.mxu0 %v989
    %995 = vmatprep.subr.mxu0 0.0
    %996 = vmatpush1.xpose.msra.mxu0 0.0
    %997 = vmatprep.subr.mxu0 0.0
    %998 = vmatpush1.xpose.msra.mxu0 0.0
    %999 = vmatprep.subr.mxu0 0.0
    %1000 = vmatpush1.xpose.msra.mxu0 0.0
    %1001 = vmatprep.subr.mxu0 0.0
    %1002 = vmatpush1.xpose.msra.mxu0 0.0
    %1003 = vmatprep.subr.mxu0 0.0
    %1004 = vmatpush1.xpose.msra.mxu0 0.0
    %1005 = vmatprep.subr.mxu0 0.0
    %1006 = vmatpush1.xpose.msra.mxu0 0.0
    %1007 = vmatprep.subr.mxu0 0.0
    %1008 = vmatpush1.xpose.msra.mxu0 0.0
    %1009 = vmatprep.subr.mxu0 0.0
    %1010 = vmatpush1.xpose.msra.mxu0 0.0
    %1011 = vmatprep.subr.mxu0 0.0
    %1012 = vmatpush1.xpose.msra.mxu0 0.0
    %1013 = vmatprep.subr.mxu0 0.0
    %1014 = vmatpush1.xpose.msra.mxu0 0.0
    %1015 = vmatprep.subr.mxu0 0.0
    %1016 = vmatpush1.xpose.msra.mxu0 0.0
    %1017 = vmatprep.subr.mxu0 0.0
    %1018 = vmatpush1.xpose.msra.mxu0 0.0
    %1019 = vmatprep.subr.mxu0 0.0
    %1020 = vmatpush1.xpose.msra.mxu0 0.0
    %1021 = vmatprep.subr.mxu0 0.0
    %1022 = vmatpush1.xpose.msra.mxu0 0.0
    %1023 = vmatprep.subr.mxu0 0.0
    %1024 = vmatpush1.xpose.msra.mxu0 0.0
    %1025 = vmatprep.subr.mxu0 0.0
    %1026 = vmatpush1.xpose.msra.mxu0 0.0
    %1027 = vmatprep.subr.mxu0 0.0
    %1028 = vmatpush1.xpose.msra.mxu0 0.0
    %1029 = vmatprep.subr.mxu0 0.0
    %1030 = vmatpush1.xpose.msra.mxu0 0.0
    %1031 = vmatprep.subr.mxu0 0.0
    %1032 = vmatpush1.xpose.msra.mxu0 0.0
    %1033 = vmatprep.subr.mxu0 0.0
    %1034 = vmatpush1.xpose.msra.mxu0 0.0
    %1035 = vmatprep.subr.mxu0 0.0
    %1036 = vmatpush1.xpose.msra.mxu0 0.0
    %1037 = vmatprep.subr.mxu0 0.0
    %1038 = vmatpush1.xpose.msra.mxu0 0.0
    %1039 = vmatprep.subr.mxu0 0.0
    %1040 = vmatpush1.xpose.msra.mxu0 0.0
    %1041 = vmatprep.subr.mxu0 0.0
    %1042 = vmatpush1.xpose.msra.mxu0 0.0
    %1043 = vmatprep.subr.mxu0 0.0
    %1044 = vmatpush1.xpose.msra.mxu0 0.0
    %1045 = vmatprep.subr.mxu0 0.0
    %1046 = vmatpush1.xpose.msra.mxu0 0.0
    %1047 = vmatprep.subr.mxu0 0.0
    %1048 = vmatpush1.xpose.msra.mxu0 0.0
    %1049 = vmatprep.subr.mxu0 0.0
    %1050 = vmatpush1.xpose.msra.mxu0 0.0
    %1051 = vmatprep.subr.mxu0 0.0
    %1052 = vmatpush1.xpose.msra.mxu0 0.0
    %1053 = vmatprep.subr.mxu0 0.0
    %1054 = vmatpush1.xpose.msra.mxu0 0.0
    %1055 = vmatprep.mubr.f32.mxu0 0.0
    %1056 = vmatmul.mubr.f32.gmra.mrb[0].mxu0 %v983
    %v1057 = vpop.f32.mrb[0].mxu0
    %v1058 = vadd.f32 0.0, %v1057
    %v1059 = vpop.f32.mrb[0].mxu0
    %1060 = vmatprep.mubr.f32.mxu0 0.0
    %1061 = vmatmul.mubr.f32.gmra.mrb[0].mxu0 %v985
    %v1062 = vpop.f32.mrb[0].mxu0
    %v1063 = vadd.f32 0.0, %v1062
    %v1064 = vpop.f32.mrb[0].mxu0
    %1065 = vdwg.mxu0
    %v1066 = vsel %vm348, %v1058, -inf
    %1067 = vmax.xlane.f32.xlu0 %v1066
    %v1068 = vpop.xlane.xlu0 %1067
    %v1069 = vsel %vm348, %v1063, -inf
    %1070 = vmax.xlane.f32.xlu0 %v1069
    %v1071 = vpop.xlane.xlu0 %1070
    %v1072 = vsub.f32 %v1058, %v1068
    %v1073 = vsub.f32 %v1063, %v1071
    %v1074 = vmul.f32 %v1072, 1.442695
    %v1075 = vpow.pop %v1074
    %v1076 = vmul.f32 %v1073, 1.442695
    %v1077 = vpow.pop %v1076
    %v1079 = vsel %vm348, %v1075, 0
    %v1082 = vsel %vm348, %v1077, 0
    %1084 = vmatprep.subr.mxu0 0.0
    %1085 = vmatpush1.msra.mxu0 %v969
    %1086 = vmatprep.subr.mxu0 0.0
    %1087 = vmatpush1.msra.mxu0 %v975
    %1088 = vmatprep.subr.mxu0 0.0
    %1089 = vmatpush1.msra.mxu0 0.0
    %1090 = vmatprep.subr.mxu0 0.0
    %1091 = vmatpush1.msra.mxu0 0.0
    %1092 = vmatprep.subr.mxu0 0.0
    %1093 = vmatpush1.msra.mxu0 0.0
    %1094 = vmatprep.subr.mxu0 0.0
    %1095 = vmatpush1.msra.mxu0 0.0
    %1096 = vmatprep.subr.mxu0 0.0
    %1097 = vmatpush1.msra.mxu0 0.0
    %1098 = vmatprep.subr.mxu0 0.0
    %1099 = vmatpush1.msra.mxu0 0.0
    %1100 = vmatprep.subr.mxu0 0.0
    %1101 = vmatpush1.msra.mxu0 0.0
    %1102 = vmatprep.subr.mxu0 0.0
    %1103 = vmatpush1.msra.mxu0 0.0
    %1104 = vmatprep.subr.mxu0 0.0
    %1105 = vmatpush1.msra.mxu0 0.0
    %1106 = vmatprep.subr.mxu0 0.0
    %1107 = vmatpush1.msra.mxu0 0.0
    %1108 = vmatprep.subr.mxu0 0.0
    %1109 = vmatpush1.msra.mxu0 0.0
    %1110 = vmatprep.subr.mxu0 0.0
    %1111 = vmatpush1.msra.mxu0 0.0
    %1112 = vmatprep.subr.mxu0 0.0
    %1113 = vmatpush1.msra.mxu0 0.0
    %1114 = vmatprep.subr.mxu0 0.0
    %1115 = vmatpush1.msra.mxu0 0.0
    %1116 = vmatprep.subr.mxu0 0.0
    %1117 = vmatpush1.msra.mxu0 0.0
    %1118 = vmatprep.subr.mxu0 0.0
    %1119 = vmatpush1.msra.mxu0 0.0
    %1120 = vmatprep.subr.mxu0 0.0
    %1121 = vmatpush1.msra.mxu0 0.0
    %1122 = vmatprep.subr.mxu0 0.0
    %1123 = vmatpush1.msra.mxu0 0.0
    %1124 = vmatprep.subr.mxu0 0.0
    %1125 = vmatpush1.msra.mxu0 0.0
    %1126 = vmatprep.subr.mxu0 0.0
    %1127 = vmatpush1.msra.mxu0 0.0
    %1128 = vmatprep.subr.mxu0 0.0
    %1129 = vmatpush1.msra.mxu0 0.0
    %1130 = vmatprep.subr.mxu0 0.0
    %1131 = vmatpush1.msra.mxu0 0.0
    %1132 = vmatprep.subr.mxu0 0.0
    %1133 = vmatpush1.msra.mxu0 0.0
    %1134 = vmatprep.subr.mxu0 0.0
    %1135 = vmatpush1.msra.mxu0 0.0
    %1136 = vmatprep.subr.mxu0 0.0
    %1137 = vmatpush1.msra.mxu0 0.0
    %1138 = vmatprep.subr.mxu0 0.0
    %1139 = vmatpush1.msra.mxu0 0.0
    %1140 = vmatprep.subr.mxu0 0.0
    %1141 = vmatpush1.msra.mxu0 0.0
    %1142 = vmatprep.subr.mxu0 0.0
    %1143 = vmatpush1.msra.mxu0 0.0
    %1144 = vmatprep.subr.mxu0 0.0
    %1145 = vmatpush1.msra.mxu0 0.0
    %1146 = vmatprep.subr.mxu0 0.0
    %1147 = vmatpush1.msra.mxu0 0.0
    %1148 = vmatprep.mubr.f32.mxu0 0.0
    %1149 = vmatmul.mubr.f32.gmra.mrb[0].mxu0 %v1079
    %v1150 = vpop.f32.mrb[0].mxu0
    %v1151 = vadd.f32 0.0, %v1150
    %v1152 = vpop.f32.mrb[0].mxu0
    %1153 = vmatprep.mubr.f32.mxu0 0.0
    %1154 = vmatmul.mubr.f32.gmra.mrb[0].mxu0 %v1082
    %v1155 = vpop.f32.mrb[0].mxu0
    %v1156 = vadd.f32 0.0, %v1155
    %v1157 = vpop.f32.mrb[0].mxu0
    %1158 = vdwg.mxu0
    %v1159 = vsel %vm348, %v1075, 0.0
    %1160 = vadd.xlane.f32.xlu0 %v1159
    %v1161 = vpop.xlane.xlu0 %1160
    %v1162 = vsel %vm348, %v1077, 0.0
    %1163 = vadd.xlane.f32.xlu0 %v1162
    %v1164 = vpop.xlane.xlu0 %1163
    %v1165 = vrcp.pop %v1161
    %v1166 = vmul.f32 %v1151, %v1165
    %v1167 = vrcp.pop %v1164
    %v1168 = vmul.f32 %v1156, %v1167
    %v1169 = vld [vmem:[%s3 + $0x50] sm:$0xff]
    %v1170 = vld [vmem:[%s3 + $0x58] sm:$0xff]
    %v1171 = vld [vmem:[%s3 + $0x60] sm:$0xff]
    %v1172 = vld [vmem:[%s3 + $0x68] sm:$0xff]
    %1173 = vrot.lane.b32.xlu0 %v967, 96
    %v1174 = vpop.permute.xlu0 %1173
    %1175 = vrot.lane.b32.xlu0 %v973, 96
    %v1176 = vpop.permute.xlu0 %1175
    %1177 = vrot.lane.b32.xlu0 %v967, 32
    %v1178 = vpop.permute.xlu0 %1177
    %1179 = vrot.lane.b32.xlu0 %v973, 32
    %v1180 = vpop.permute.xlu0 %1179
    %v1181 = vsel %vm111, %v1174, 0
    %v1183 = vsel %vm111, %v1176, 0
    %v1185 = vsel %vm111, %v1178, 0
    %v1187 = vsel %vm111, %v1180, 0
    %1189 = vmatprep.subr.mxu0 0.0
    %1190 = vmatpush1.xpose.msra.mxu0 %v1185
    %1191 = vmatprep.subr.mxu0 0.0
    %1192 = vmatpush1.xpose.msra.mxu0 %v1187
    %1193 = vmatprep.subr.mxu0 0.0
    %1194 = vmatpush1.xpose.msra.mxu0 0.0
    %1195 = vmatprep.subr.mxu0 0.0
    %1196 = vmatpush1.xpose.msra.mxu0 0.0
    %1197 = vmatprep.subr.mxu0 0.0
    %1198 = vmatpush1.xpose.msra.mxu0 0.0
    %1199 = vmatprep.subr.mxu0 0.0
    %1200 = vmatpush1.xpose.msra.mxu0 0.0
    %1201 = vmatprep.subr.mxu0 0.0
    %1202 = vmatpush1.xpose.msra.mxu0 0.0
    %1203 = vmatprep.subr.mxu0 0.0
    %1204 = vmatpush1.xpose.msra.mxu0 0.0
    %1205 = vmatprep.subr.mxu0 0.0
    %1206 = vmatpush1.xpose.msra.mxu0 0.0
    %1207 = vmatprep.subr.mxu0 0.0
    %1208 = vmatpush1.xpose.msra.mxu0 0.0
    %1209 = vmatprep.subr.mxu0 0.0
    %1210 = vmatpush1.xpose.msra.mxu0 0.0
    %1211 = vmatprep.subr.mxu0 0.0
    %1212 = vmatpush1.xpose.msra.mxu0 0.0
    %1213 = vmatprep.subr.mxu0 0.0
    %1214 = vmatpush1.xpose.msra.mxu0 0.0
    %1215 = vmatprep.subr.mxu0 0.0
    %1216 = vmatpush1.xpose.msra.mxu0 0.0
    %1217 = vmatprep.subr.mxu0 0.0
    %1218 = vmatpush1.xpose.msra.mxu0 0.0
    %1219 = vmatprep.subr.mxu0 0.0
    %1220 = vmatpush1.xpose.msra.mxu0 0.0
    %1221 = vmatprep.subr.mxu0 0.0
    %1222 = vmatpush1.xpose.msra.mxu0 0.0
    %1223 = vmatprep.subr.mxu0 0.0
    %1224 = vmatpush1.xpose.msra.mxu0 0.0
    %1225 = vmatprep.subr.mxu0 0.0
    %1226 = vmatpush1.xpose.msra.mxu0 0.0
    %1227 = vmatprep.subr.mxu0 0.0
    %1228 = vmatpush1.xpose.msra.mxu0 0.0
    %1229 = vmatprep.subr.mxu0 0.0
    %1230 = vmatpush1.xpose.msra.mxu0 0.0
    %1231 = vmatprep.subr.mxu0 0.0
    %1232 = vmatpush1.xpose.msra.mxu0 0.0
    %1233 = vmatprep.subr.mxu0 0.0
    %1234 = vmatpush1.xpose.msra.mxu0 0.0
    %1235 = vmatprep.subr.mxu0 0.0
    %1236 = vmatpush1.xpose.msra.mxu0 0.0
    %1237 = vmatprep.subr.mxu0 0.0
    %1238 = vmatpush1.xpose.msra.mxu0 0.0
    %1239 = vmatprep.subr.mxu0 0.0
    %1240 = vmatpush1.xpose.msra.mxu0 0.0
    %1241 = vmatprep.subr.mxu0 0.0
    %1242 = vmatpush1.xpose.msra.mxu0 0.0
    %1243 = vmatprep.subr.mxu0 0.0
    %1244 = vmatpush1.xpose.msra.mxu0 0.0
    %1245 = vmatprep.subr.mxu0 0.0
    %1246 = vmatpush1.xpose.msra.mxu0 0.0
    %1247 = vmatprep.subr.mxu0 0.0
    %1248 = vmatpush1.xpose.msra.mxu0 0.0
    %1249 = vmatprep.subr.mxu0 0.0
    %1250 = vmatpush1.xpose.msra.mxu0 0.0
    %1251 = vmatprep.subr.mxu0 0.0
    %1252 = vmatpush1.xpose.msra.mxu0 0.0
    %1253 = vmatprep.mubr.f32.mxu0 0.0
    %1254 = vmatmul.mubr.f32.gmra.mrb[0].mxu0 %v1181
    %v1255 = vpop.f32.mrb[0].mxu0
    %v1256 = vadd.f32 0.0, %v1255
    %v1257 = vpop.f32.mrb[0].mxu0
    %1258 = vmatprep.mubr.f32.mxu0 0.0
    %1259 = vmatmul.mubr.f32.gmra.mrb[0].mxu0 %v1183
    %v1260 = vpop.f32.mrb[0].mxu0
    %v1261 = vadd.f32 0.0, %v1260
    %v1262 = vpop.f32.mrb[0].mxu0
    %1263 = vdwg.mxu0
    %v1264 = vsel %vm348, %v1256, -inf
    %1265 = vmax.xlane.f32.xlu0 %v1264
    %v1266 = vpop.xlane.xlu0 %1265
    %v1267 = vsel %vm348, %v1261, -inf
    %1268 = vmax.xlane.f32.xlu0 %v1267
    %v1269 = vpop.xlane.xlu0 %1268
    %v1270 = vsub.f32 %v1256, %v1266
    %v1271 = vsub.f32 %v1261, %v1269
    %v1272 = vmul.f32 %v1270, 1.442695
    %v1273 = vpow.pop %v1272
    %v1274 = vmul.f32 %v1271, 1.442695
    %v1275 = vpow.pop %v1274
    %1278 = vrot.lane.b32.xlu0 %v969, 96
    %v1279 = vpop.permute.xlu0 %1278
    %1280 = vrot.lane.b32.xlu0 %v975, 96
    %v1281 = vpop.permute.xlu0 %1280
    %v1285 = vsel %vm348, %v1273, 0
    %v1288 = vsel %vm348, %v1275, 0
    %1290 = vmatprep.subr.mxu0 0.0
    %1291 = vmatpush1.msra.mxu0 %v1279
    %1292 = vmatprep.subr.mxu0 0.0
    %1293 = vmatpush1.msra.mxu0 %v1281
    %1294 = vmatprep.subr.mxu0 0.0
    %1295 = vmatpush1.msra.mxu0 0.0
    %1296 = vmatprep.subr.mxu0 0.0
    %1297 = vmatpush1.msra.mxu0 0.0
    %1298 = vmatprep.subr.mxu0 0.0
    %1299 = vmatpush1.msra.mxu0 0.0
    %1300 = vmatprep.subr.mxu0 0.0
    %1301 = vmatpush1.msra.mxu0 0.0
    %1302 = vmatprep.subr.mxu0 0.0
    %1303 = vmatpush1.msra.mxu0 0.0
    %1304 = vmatprep.subr.mxu0 0.0
    %1305 = vmatpush1.msra.mxu0 0.0
    %1306 = vmatprep.subr.mxu0 0.0
    %1307 = vmatpush1.msra.mxu0 0.0
    %1308 = vmatprep.subr.mxu0 0.0
    %1309 = vmatpush1.msra.mxu0 0.0
    %1310 = vmatprep.subr.mxu0 0.0
    %1311 = vmatpush1.msra.mxu0 0.0
    %1312 = vmatprep.subr.mxu0 0.0
    %1313 = vmatpush1.msra.mxu0 0.0
    %1314 = vmatprep.subr.mxu0 0.0
    %1315 = vmatpush1.msra.mxu0 0.0
    %1316 = vmatprep.subr.mxu0 0.0
    %1317 = vmatpush1.msra.mxu0 0.0
    %1318 = vmatprep.subr.mxu0 0.0
    %1319 = vmatpush1.msra.mxu0 0.0
    %1320 = vmatprep.subr.mxu0 0.0
    %1321 = vmatpush1.msra.mxu0 0.0
    %1322 = vmatprep.subr.mxu0 0.0
    %1323 = vmatpush1.msra.mxu0 0.0
    %1324 = vmatprep.subr.mxu0 0.0
    %1325 = vmatpush1.msra.mxu0 0.0
    %1326 = vmatprep.subr.mxu0 0.0
    %1327 = vmatpush1.msra.mxu0 0.0
    %1328 = vmatprep.subr.mxu0 0.0
    %1329 = vmatpush1.msra.mxu0 0.0
    %1330 = vmatprep.subr.mxu0 0.0
    %1331 = vmatpush1.msra.mxu0 0.0
    %1332 = vmatprep.subr.mxu0 0.0
    %1333 = vmatpush1.msra.mxu0 0.0
    %1334 = vmatprep.subr.mxu0 0.0
    %1335 = vmatpush1.msra.mxu0 0.0
    %1336 = vmatprep.subr.mxu0 0.0
    %1337 = vmatpush1.msra.mxu0 0.0
    %1338 = vmatprep.subr.mxu0 0.0
    %1339 = vmatpush1.msra.mxu0 0.0
    %1340 = vmatprep.subr.mxu0 0.0
    %1341 = vmatpush1.msra.mxu0 0.0
    %1342 = vmatprep.subr.mxu0 0.0
    %1343 = vmatpush1.msra.mxu0 0.0
    %1344 = vmatprep.subr.mxu0 0.0
    %1345 = vmatpush1.msra.mxu0 0.0
    %1346 = vmatprep.subr.mxu0 0.0
    %1347 = vmatpush1.msra.mxu0 0.0
    %1348 = vmatprep.subr.mxu0 0.0
    %1349 = vmatpush1.msra.mxu0 0.0
    %1350 = vmatprep.subr.mxu0 0.0
    %1351 = vmatpush1.msra.mxu0 0.0
    %1352 = vmatprep.subr.mxu0 0.0
    %1353 = vmatpush1.msra.mxu0 0.0
    %1354 = vmatprep.mubr.f32.mxu0 0.0
    %1355 = vmatmul.mubr.f32.gmra.mrb[0].mxu0 %v1285
    %v1356 = vpop.f32.mrb[0].mxu0
    %v1357 = vadd.f32 0.0, %v1356
    %v1358 = vpop.f32.mrb[0].mxu0
    %1359 = vmatprep.mubr.f32.mxu0 0.0
    %1360 = vmatmul.mubr.f32.gmra.mrb[0].mxu0 %v1288
    %v1361 = vpop.f32.mrb[0].mxu0
    %v1362 = vadd.f32 0.0, %v1361
    %v1363 = vpop.f32.mrb[0].mxu0
    %1364 = vdwg.mxu0
    %v1365 = vsel %vm348, %v1273, 0.0
    %1366 = vadd.xlane.f32.xlu0 %v1365
    %v1367 = vpop.xlane.xlu0 %1366
    %v1368 = vsel %vm348, %v1275, 0.0
    %1369 = vadd.xlane.f32.xlu0 %v1368
    %v1370 = vpop.xlane.xlu0 %1369
    %v1371 = vrcp.pop %v1367
    %v1372 = vmul.f32 %v1357, %v1371
    %v1373 = vrcp.pop %v1370
    %v1374 = vmul.f32 %v1362, %v1373
    %v1375 = vld [vmem:[%s3 + $0x70] sm:$0xff]
    %v1376 = vld [vmem:[%s3 + $0x78] sm:$0xff]
    %v1377 = vld [vmem:[%s3 + $0x80] sm:$0xff]
    %v1378 = vld [vmem:[%s3 + $0x88] sm:$0xff]
    %v1380 = vsel %vm111, %v1372, 0
    %v1383 = vsel %vm111, %v1374, 0
    %1385 = vmatprep.subr.mxu0 0.0
    %1386 = vmatpush1.msra.mxu0 %v1375
    %1387 = vmatprep.subr.mxu0 0.0
    %1388 = vmatpush1.msra.mxu0 %v1376
    %1389 = vmatprep.subr.mxu0 0.0
    %1390 = vmatpush1.msra.mxu0 %v1377
    %1391 = vmatprep.subr.mxu0 0.0
    %1392 = vmatpush1.msra.mxu0 %v1378
    %1393 = vmatprep.subr.mxu0 0.0
    %1394 = vmatpush1.msra.mxu0 0.0
    %1395 = vmatprep.subr.mxu0 0.0
    %1396 = vmatpush1.msra.mxu0 0.0
    %1397 = vmatprep.subr.mxu0 0.0
    %1398 = vmatpush1.msra.mxu0 0.0
    %1399 = vmatprep.subr.mxu0 0.0
    %1400 = vmatpush1.msra.mxu0 0.0
    %1401 = vmatprep.subr.mxu0 0.0
    %1402 = vmatpush1.msra.mxu0 0.0
    %1403 = vmatprep.subr.mxu0 0.0
    %1404 = vmatpush1.msra.mxu0 0.0
    %1405 = vmatprep.subr.mxu0 0.0
    %1406 = vmatpush1.msra.mxu0 0.0
    %1407 = vmatprep.subr.mxu0 0.0
    %1408 = vmatpush1.msra.mxu0 0.0
    %1409 = vmatprep.subr.mxu0 0.0
    %1410 = vmatpush1.msra.mxu0 0.0
    %1411 = vmatprep.subr.mxu0 0.0
    %1412 = vmatpush1.msra.mxu0 0.0
    %1413 = vmatprep.subr.mxu0 0.0
    %1414 = vmatpush1.msra.mxu0 0.0
    %1415 = vmatprep.subr.mxu0 0.0
    %1416 = vmatpush1.msra.mxu0 0.0
    %1417 = vmatprep.subr.mxu0 0.0
    %1418 = vmatpush1.msra.mxu0 0.0
    %1419 = vmatprep.subr.mxu0 0.0
    %1420 = vmatpush1.msra.mxu0 0.0
    %1421 = vmatprep.subr.mxu0 0.0
    %1422 = vmatpush1.msra.mxu0 0.0
    %1423 = vmatprep.subr.mxu0 0.0
    %1424 = vmatpush1.msra.mxu0 0.0
    %1425 = vmatprep.subr.mxu0 0.0
    %1426 = vmatpush1.msra.mxu0 0.0
    %1427 = vmatprep.subr.mxu0 0.0
    %1428 = vmatpush1.msra.mxu0 0.0
    %1429 = vmatprep.subr.mxu0 0.0
    %1430 = vmatpush1.msra.mxu0 0.0
    %1431 = vmatprep.subr.mxu0 0.0
    %1432 = vmatpush1.msra.mxu0 0.0
    %1433 = vmatprep.subr.mxu0 0.0
    %1434 = vmatpush1.msra.mxu0 0.0
    %1435 = vmatprep.subr.mxu0 0.0
    %1436 = vmatpush1.msra.mxu0 0.0
    %1437 = vmatprep.subr.mxu0 0.0
    %1438 = vmatpush1.msra.mxu0 0.0
    %1439 = vmatprep.subr.mxu0 0.0
    %1440 = vmatpush1.msra.mxu0 0.0
    %1441 = vmatprep.subr.mxu0 0.0
    %1442 = vmatpush1.msra.mxu0 0.0
    %1443 = vmatprep.subr.mxu0 0.0
    %1444 = vmatpush1.msra.mxu0 0.0
    %1445 = vmatprep.subr.mxu0 0.0
    %1446 = vmatpush1.msra.mxu0 0.0
    %1447 = vmatprep.subr.mxu0 0.0
    %1448 = vmatpush1.msra.mxu0 0.0
    %1449 = vmatprep.mubr.f32.mxu0 0.0
    %1450 = vmatmul.mubr.f32.gmra.mrb[0].mxu0 %v1380
    %v1451 = vpop.f32.mrb[0].mxu0
    %v1452 = vadd.f32 0.0, %v1451
    %v1453 = vpop.f32.mrb[0].mxu0
    %1454 = vmatprep.mubr.f32.mxu0 0.0
    %1455 = vmatmul.mubr.f32.gmra.mrb[0].mxu0 %v1383
    %v1456 = vpop.f32.mrb[0].mxu0
    %v1457 = vadd.f32 0.0, %v1456
    %v1458 = vpop.f32.mrb[0].mxu0
    %1459 = vdwg.mxu0
    %v1461 = vsel %vm111, %v1166, 0
    %v1464 = vsel %vm111, %v1168, 0
    %1466 = vmatprep.subr.mxu0 0.0
    %1467 = vmatpush1.msra.mxu0 %v1169
    %1468 = vmatprep.subr.mxu0 0.0
    %1469 = vmatpush1.msra.mxu0 %v1170
    %1470 = vmatprep.subr.mxu0 0.0
    %1471 = vmatpush1.msra.mxu0 %v1171
    %1472 = vmatprep.subr.mxu0 0.0
    %1473 = vmatpush1.msra.mxu0 %v1172
    %1474 = vmatprep.subr.mxu0 0.0
    %1475 = vmatpush1.msra.mxu0 0.0
    %1476 = vmatprep.subr.mxu0 0.0
    %1477 = vmatpush1.msra.mxu0 0.0
    %1478 = vmatprep.subr.mxu0 0.0
    %1479 = vmatpush1.msra.mxu0 0.0
    %1480 = vmatprep.subr.mxu0 0.0
    %1481 = vmatpush1.msra.mxu0 0.0
    %1482 = vmatprep.subr.mxu0 0.0
    %1483 = vmatpush1.msra.mxu0 0.0
    %1484 = vmatprep.subr.mxu0 0.0
    %1485 = vmatpush1.msra.mxu0 0.0
    %1486 = vmatprep.subr.mxu0 0.0
    %1487 = vmatpush1.msra.mxu0 0.0
    %1488 = vmatprep.subr.mxu0 0.0
    %1489 = vmatpush1.msra.mxu0 0.0
    %1490 = vmatprep.subr.mxu0 0.0
    %1491 = vmatpush1.msra.mxu0 0.0
    %1492 = vmatprep.subr.mxu0 0.0
    %1493 = vmatpush1.msra.mxu0 0.0
    %1494 = vmatprep.subr.mxu0 0.0
    %1495 = vmatpush1.msra.mxu0 0.0
    %1496 = vmatprep.subr.mxu0 0.0
    %1497 = vmatpush1.msra.mxu0 0.0
    %1498 = vmatprep.subr.mxu0 0.0
    %1499 = vmatpush1.msra.mxu0 0.0
    %1500 = vmatprep.subr.mxu0 0.0
    %1501 = vmatpush1.msra.mxu0 0.0
    %1502 = vmatprep.subr.mxu0 0.0
    %1503 = vmatpush1.msra.mxu0 0.0
    %1504 = vmatprep.subr.mxu0 0.0
    %1505 = vmatpush1.msra.mxu0 0.0
    %1506 = vmatprep.subr.mxu0 0.0
    %1507 = vmatpush1.msra.mxu0 0.0
    %1508 = vmatprep.subr.mxu0 0.0
    %1509 = vmatpush1.msra.mxu0 0.0
    %1510 = vmatprep.subr.mxu0 0.0
    %1511 = vmatpush1.msra.mxu0 0.0
    %1512 = vmatprep.subr.mxu0 0.0
    %1513 = vmatpush1.msra.mxu0 0.0
    %1514 = vmatprep.subr.mxu0 0.0
    %1515 = vmatpush1.msra.mxu0 0.0
    %1516 = vmatprep.subr.mxu0 0.0
    %1517 = vmatpush1.msra.mxu0 0.0
    %1518 = vmatprep.subr.mxu0 0.0
    %1519 = vmatpush1.msra.mxu0 0.0
    %1520 = vmatprep.subr.mxu0 0.0
    %1521 = vmatpush1.msra.mxu0 0.0
    %1522 = vmatprep.subr.mxu0 0.0
    %1523 = vmatpush1.msra.mxu0 0.0
    %1524 = vmatprep.subr.mxu0 0.0
    %1525 = vmatpush1.msra.mxu0 0.0
    %1526 = vmatprep.subr.mxu0 0.0
    %1527 = vmatpush1.msra.mxu0 0.0
    %1528 = vmatprep.subr.mxu0 0.0
    %1529 = vmatpush1.msra.mxu0 0.0
    %1530 = vmatprep.mubr.f32.mxu0 0.0
    %1531 = vmatmul.mubr.f32.gmra.mrb[0].mxu0 %v1461
    %v1532 = vpop.f32.mrb[0].mxu0
    %v1533 = vadd.f32 %v1452, %v1532
    %v1534 = vpop.f32.mrb[0].mxu0
    %1535 = vmatprep.mubr.f32.mxu0 0.0
    %1536 = vmatmul.mubr.f32.gmra.mrb[0].mxu0 %v1464
    %v1537 = vpop.f32.mrb[0].mxu0
    %v1538 = vadd.f32 %v1457, %v1537
    %v1539 = vpop.f32.mrb[0].mxu0
    %1540 = vdwg.mxu0
    %v1541 = vld [vmem:[%s2 + $0x90] ss:$0 sm:$0xff]
    %v1542 = vadd.f32 %v1533, %v1541
    %v1543 = vadd.f32 %v1538, %v1541
    %v1544 = vadd.f32 %v1542, %v871
    %v1545 = vadd.f32 %v1543, %v872
    %v1546 = vld [vmem:[%s2 + $0x91] ss:$0 sm:$0xff]
    %v1547 = vld [vmem:[%s2 + $0x92] ss:$0 sm:$0xff]
    %v1548 = vsel %vm111, %v1544, 0.0
    %1549 = vadd.xlane.f32.xlu0 %v1548
    %v1550 = vpop.xlane.xlu0 %1549
    %v1551 = vsel %vm111, %v1545, 0.0
    %1552 = vadd.xlane.f32.xlu0 %v1551
    %v1553 = vpop.xlane.xlu0 %1552
    %v1554 = vmul.f32 %v1550, %v118
    %v1555 = vmul.f32 %v1553, %v118
    %v1556 = vsub.f32 %v1544, %v1554
    %v1557 = vsub.f32 %v1545, %v1555
    %v1558 = vmul.f32 %v1556, %v1556
    %v1559 = vmul.f32 %v1557, %v1557
    %v1560 = vsel %vm111, %v1558, 0.0
    %1561 = vadd.xlane.f32.xlu0 %v1560
    %v1562 = vpop.xlane.xlu0 %1561
    %v1563 = vsel %vm111, %v1559, 0.0
    %1564 = vadd.xlane.f32.xlu0 %v1563
    %v1565 = vpop.xlane.xlu0 %1564
    %v1566 = vmul.f32 %v1562, %v118
    %v1567 = vmul.f32 %v1565, %v118
    %v1568 = vadd.f32 %v1566, 1e-05
    %v1569 = vadd.f32 %v1567, 1e-05
    %v1570 = vrsqrt.pop %v1568
    %v1571 = vrsqrt.pop %v1569
    %v1572 = vmul.f32 %v1556, %v1570
    %v1573 = vmul.f32 %v1557, %v1571
    %v1574 = vmul.f32 %v1572, %v1546
    %v1575 = vmul.f32 %v1573, %v1546
    %v1576 = vadd.f32 %v1574, %v1547
    %v1577 = vadd.f32 %v1575, %v1547
    %vm1578 = vcmp.gt.f32.partialorder %v1576, 0.0
    %vm1579 = vcmp.gt.f32.partialorder %v1577, 0.0
    %v1580 = vmin.f32 %v1576, 0.0
    %v1581 = vmin.f32 %v1577, 0.0
    %v1582 = vmul.f32 %v1580, 1.442695
    %v1583 = vpow.pop %v1582
    %v1584 = vmul.f32 %v1581, 1.442695
    %v1585 = vpow.pop %v1584
    %v1586 = vsub.f32 %v1583, 1.0
    %v1587 = vsub.f32 %v1585, 1.0
    %v1588 = vsel %vm1578, %v1576, %v1586
    %v1589 = vsel %vm1579, %v1577, %v1587
    %v1590 = vld [vmem:[%s3 + $0x90] sm:$0xff]
    %v1591 = vld [vmem:[%s3 + $0x98] sm:$0xff]
    %v1592 = vld [vmem:[%s3 + $0xa0] sm:$0xff]
    %v1593 = vld [vmem:[%s3 + $0xa8] sm:$0xff]
    %v1594 = vld [vmem:[%s2 + $0x93] ss:$0 sm:$0xff]
    %v1596 = vsel %vm111, %v1588, 0
    %v1599 = vsel %vm111, %v1589, 0
    %1601 = vmatprep.subr.mxu0 0.0
    %1602 = vmatpush1.msra.mxu0 %v1590
    %1603 = vmatprep.subr.mxu0 0.0
    %1604 = vmatpush1.msra.mxu0 %v1591
    %1605 = vmatprep.subr.mxu0 0.0
    %1606 = vmatpush1.msra.mxu0 %v1592
    %1607 = vmatprep.subr.mxu0 0.0
    %1608 = vmatpush1.msra.mxu0 %v1593
    %1609 = vmatprep.subr.mxu0 0.0
    %1610 = vmatpush1.msra.mxu0 0.0
    %1611 = vmatprep.subr.mxu0 0.0
    %1612 = vmatpush1.msra.mxu0 0.0
    %1613 = vmatprep.subr.mxu0 0.0
    %1614 = vmatpush1.msra.mxu0 0.0
    %1615 = vmatprep.subr.mxu0 0.0
    %1616 = vmatpush1.msra.mxu0 0.0
    %1617 = vmatprep.subr.mxu0 0.0
    %1618 = vmatpush1.msra.mxu0 0.0
    %1619 = vmatprep.subr.mxu0 0.0
    %1620 = vmatpush1.msra.mxu0 0.0
    %1621 = vmatprep.subr.mxu0 0.0
    %1622 = vmatpush1.msra.mxu0 0.0
    %1623 = vmatprep.subr.mxu0 0.0
    %1624 = vmatpush1.msra.mxu0 0.0
    %1625 = vmatprep.subr.mxu0 0.0
    %1626 = vmatpush1.msra.mxu0 0.0
    %1627 = vmatprep.subr.mxu0 0.0
    %1628 = vmatpush1.msra.mxu0 0.0
    %1629 = vmatprep.subr.mxu0 0.0
    %1630 = vmatpush1.msra.mxu0 0.0
    %1631 = vmatprep.subr.mxu0 0.0
    %1632 = vmatpush1.msra.mxu0 0.0
    %1633 = vmatprep.subr.mxu0 0.0
    %1634 = vmatpush1.msra.mxu0 0.0
    %1635 = vmatprep.subr.mxu0 0.0
    %1636 = vmatpush1.msra.mxu0 0.0
    %1637 = vmatprep.subr.mxu0 0.0
    %1638 = vmatpush1.msra.mxu0 0.0
    %1639 = vmatprep.subr.mxu0 0.0
    %1640 = vmatpush1.msra.mxu0 0.0
    %1641 = vmatprep.subr.mxu0 0.0
    %1642 = vmatpush1.msra.mxu0 0.0
    %1643 = vmatprep.subr.mxu0 0.0
    %1644 = vmatpush1.msra.mxu0 0.0
    %1645 = vmatprep.subr.mxu0 0.0
    %1646 = vmatpush1.msra.mxu0 0.0
    %1647 = vmatprep.subr.mxu0 0.0
    %1648 = vmatpush1.msra.mxu0 0.0
    %1649 = vmatprep.subr.mxu0 0.0
    %1650 = vmatpush1.msra.mxu0 0.0
    %1651 = vmatprep.subr.mxu0 0.0
    %1652 = vmatpush1.msra.mxu0 0.0
    %1653 = vmatprep.subr.mxu0 0.0
    %1654 = vmatpush1.msra.mxu0 0.0
    %1655 = vmatprep.subr.mxu0 0.0
    %1656 = vmatpush1.msra.mxu0 0.0
    %1657 = vmatprep.subr.mxu0 0.0
    %1658 = vmatpush1.msra.mxu0 0.0
    %1659 = vmatprep.subr.mxu0 0.0
    %1660 = vmatpush1.msra.mxu0 0.0
    %1661 = vmatprep.subr.mxu0 0.0
    %1662 = vmatpush1.msra.mxu0 0.0
    %1663 = vmatprep.subr.mxu0 0.0
    %1664 = vmatpush1.msra.mxu0 0.0
    %1665 = vmatprep.mubr.f32.mxu0 0.0
    %1666 = vmatmul.mubr.f32.gmra.mrb[0].mxu0 %v1596
    %v1667 = vpop.f32.mrb[0].mxu0
    %v1668 = vadd.f32 %v1594, %v1667
    %v1669 = vpop.f32.mrb[0].mxu0
    %1670 = vmatprep.mubr.f32.mxu0 0.0
    %1671 = vmatmul.mubr.f32.gmra.mrb[0].mxu0 %v1599
    %v1672 = vpop.f32.mrb[0].mxu0
    %v1673 = vadd.f32 %v1594, %v1672
    %v1674 = vpop.f32.mrb[0].mxu0
    %1675 = vdwg.mxu0
    %v1676 = vlaneseq
    %v1677 = vand.u32 %v1676, 127
    %v1678 = vld [vmem:[%s1] sm:$0xff]
    %v1679 = vld [vmem:[%s1 + $0x8] sm:$0xff]
    %1680 = vset.pattern.permute.xlu0 0
    %1681 = vperm.xlu0 %1680, %v1678
    %v1682 = vpop.permute.xlu0 %1681
    %1683 = vset.pattern.permute.xlu0 0
    %1684 = vperm.xlu0 %1683, %v1679
    %v1685 = vpop.permute.xlu0 %1684
    %vm1686 = vcmp.eq.s32.totalorder %v1677, %v1682
    %vm1687 = vcmp.eq.s32.totalorder %v1677, %v1685
    %v1688 = vsel %vm1686, 1, 0
    %v1689 = vsel %vm1687, 1, 0
    %v1690 = vcvt.s32.f32 %v1688
    %v1691 = vcvt.s32.f32 %v1689
    %v1693 = vsel %vm348, %v1690, 0
    %v1696 = vsel %vm348, %v1691, 0
    %1698 = vmatprep.subr.mxu0 0.0
    %1699 = vmatpush1.msra.mxu0 %v1668
    %1700 = vmatprep.subr.mxu0 0.0
    %1701 = vmatpush1.msra.mxu0 %v1673
    %1702 = vmatprep.subr.mxu0 0.0
    %1703 = vmatpush1.msra.mxu0 0.0
    %1704 = vmatprep.subr.mxu0 0.0
    %1705 = vmatpush1.msra.mxu0 0.0
    %1706 = vmatprep.subr.mxu0 0.0
    %1707 = vmatpush1.msra.mxu0 0.0
    %1708 = vmatprep.subr.mxu0 0.0
    %1709 = vmatpush1.msra.mxu0 0.0
    %1710 = vmatprep.subr.mxu0 0.0
    %1711 = vmatpush1.msra.mxu0 0.0
    %1712 = vmatprep.subr.mxu0 0.0
    %1713 = vmatpush1.msra.mxu0 0.0
    %1714 = vmatprep.subr.mxu0 0.0
    %1715 = vmatpush1.msra.mxu0 0.0
    %1716 = vmatprep.subr.mxu0 0.0
    %1717 = vmatpush1.msra.mxu0 0.0
    %1718 = vmatprep.subr.mxu0 0.0
    %1719 = vmatpush1.msra.mxu0 0.0
    %1720 = vmatprep.subr.mxu0 0.0
    %1721 = vmatpush1.msra.mxu0 0.0
    %1722 = vmatprep.subr.mxu0 0.0
    %1723 = vmatpush1.msra.mxu0 0.0
    %1724 = vmatprep.subr.mxu0 0.0
    %1725 = vmatpush1.msra.mxu0 0.0
    %1726 = vmatprep.subr.mxu0 0.0
    %1727 = vmatpush1.msra.mxu0 0.0
    %1728 = vmatprep.subr.mxu0 0.0
    %1729 = vmatpush1.msra.mxu0 0.0
    %1730 = vmatprep.subr.mxu0 0.0
    %1731 = vmatpush1.msra.mxu0 0.0
    %1732 = vmatprep.subr.mxu0 0.0
    %1733 = vmatpush1.msra.mxu0 0.0
    %1734 = vmatprep.subr.mxu0 0.0
    %1735 = vmatpush1.msra.mxu0 0.0
    %1736 = vmatprep.subr.mxu0 0.0
    %1737 = vmatpush1.msra.mxu0 0.0
    %1738 = vmatprep.subr.mxu0 0.0
    %1739 = vmatpush1.msra.mxu0 0.0
    %1740 = vmatprep.subr.mxu0 0.0
    %1741 = vmatpush1.msra.mxu0 0.0
    %1742 = vmatprep.subr.mxu0 0.0
    %1743 = vmatpush1.msra.mxu0 0.0
    %1744 = vmatprep.subr.mxu0 0.0
    %1745 = vmatpush1.msra.mxu0 0.0
    %1746 = vmatprep.subr.mxu0 0.0
    %1747 = vmatpush1.msra.mxu0 0.0
    %1748 = vmatprep.subr.mxu0 0.0
    %1749 = vmatpush1.msra.mxu0 0.0
    %1750 = vmatprep.subr.mxu0 0.0
    %1751 = vmatpush1.msra.mxu0 0.0
    %1752 = vmatprep.subr.mxu0 0.0
    %1753 = vmatpush1.msra.mxu0 0.0
    %1754 = vmatprep.subr.mxu0 0.0
    %1755 = vmatpush1.msra.mxu0 0.0
    %1756 = vmatprep.subr.mxu0 0.0
    %1757 = vmatpush1.msra.mxu0 0.0
    %1758 = vmatprep.subr.mxu0 0.0
    %1759 = vmatpush1.msra.mxu0 0.0
    %1760 = vmatprep.subr.mxu0 0.0
    %1761 = vmatpush1.msra.mxu0 0.0
    %1762 = vmatprep.mubr.f32.mxu0 0.0
    %1763 = vmatmul.mubr.f32.gmra.mrb[0].mxu0 %v1693
    %v1764 = vpop.f32.mrb[0].mxu0
    %v1765 = vadd.f32 0.0, %v1764
    %v1766 = vpop.f32.mrb[0].mxu0
    %1767 = vmatprep.mubr.f32.mxu0 0.0
    %1768 = vmatmul.mubr.f32.gmra.mrb[0].mxu0 %v1696
    %v1769 = vpop.f32.mrb[0].mxu0
    %v1770 = vadd.f32 0.0, %v1769
    %v1771 = vpop.f32.mrb[0].mxu0
    %1772 = vdwg.mxu0
    %v1773 = vld [vmem:[%s3 + $0xb0] sm:$0xff]
    %v1774 = vld [vmem:[%s3 + $0xb8] sm:$0xff]
    %v1775 = vld [vmem:[%s3 + $0xc0] sm:$0xff]
    %v1776 = vld [vmem:[%s3 + $0xc8] sm:$0xff]
    %v1777 = vld [vmem:[%s3 + $0xd0] sm:$0xff]
    %v1778 = vld [vmem:[%s3 + $0xd8] sm:$0xff]
    %v1779 = vld [vmem:[%s3 + $0xe0] sm:$0xff]
    %v1780 = vld [vmem:[%s3 + $0xe8] sm:$0xff]
    %v1782 = vsel %vm111, %v1770, 0
    %1784 = vmatprep.subr.mxu0 0.0
    %1785 = vmatpush1.msra.mxu0 %v1777
    %1786 = vmatprep.subr.mxu0 0.0
    %1787 = vmatpush1.msra.mxu0 %v1778
    %1788 = vmatprep.subr.mxu0 0.0
    %1789 = vmatpush1.msra.mxu0 %v1779
    %1790 = vmatprep.subr.mxu0 0.0
    %1791 = vmatpush1.msra.mxu0 %v1780
    %1792 = vmatprep.subr.mxu0 0.0
    %1793 = vmatpush1.msra.mxu0 0.0
    %1794 = vmatprep.subr.mxu0 0.0
    %1795 = vmatpush1.msra.mxu0 0.0
    %1796 = vmatprep.subr.mxu0 0.0
    %1797 = vmatpush1.msra.mxu0 0.0
    %1798 = vmatprep.subr.mxu0 0.0
    %1799 = vmatpush1.msra.mxu0 0.0
    %1800 = vmatprep.subr.mxu0 0.0
    %1801 = vmatpush1.msra.mxu0 0.0
    %1802 = vmatprep.subr.mxu0 0.0
    %1803 = vmatpush1.msra.mxu0 0.0
    %1804 = vmatprep.subr.mxu0 0.0
    %1805 = vmatpush1.msra.mxu0 0.0
    %1806 = vmatprep.subr.mxu0 0.0
    %1807 = vmatpush1.msra.mxu0 0.0
    %1808 = vmatprep.subr.mxu0 0.0
    %1809 = vmatpush1.msra.mxu0 0.0
    %1810 = vmatprep.subr.mxu0 0.0
    %1811 = vmatpush1.msra.mxu0 0.0
    %1812 = vmatprep.subr.mxu0 0.0
    %1813 = vmatpush1.msra.mxu0 0.0
    %1814 = vmatprep.subr.mxu0 0.0
    %1815 = vmatpush1.msra.mxu0 0.0
    %1816 = vmatprep.subr.mxu0 0.0
    %1817 = vmatpush1.msra.mxu0 0.0
    %1818 = vmatprep.subr.mxu0 0.0
    %1819 = vmatpush1.msra.mxu0 0.0
    %1820 = vmatprep.subr.mxu0 0.0
    %1821 = vmatpush1.msra.mxu0 0.0
    %1822 = vmatprep.subr.mxu0 0.0
    %1823 = vmatpush1.msra.mxu0 0.0
    %1824 = vmatprep.subr.mxu0 0.0
    %1825 = vmatpush1.msra.mxu0 0.0
    %1826 = vmatprep.subr.mxu0 0.0
    %1827 = vmatpush1.msra.mxu0 0.0
    %1828 = vmatprep.subr.mxu0 0.0
    %1829 = vmatpush1.msra.mxu0 0.0
    %1830 = vmatprep.subr.mxu0 0.0
    %1831 = vmatpush1.msra.mxu0 0.0
    %1832 = vmatprep.subr.mxu0 0.0
    %1833 = vmatpush1.msra.mxu0 0.0
    %1834 = vmatprep.subr.mxu0 0.0
    %1835 = vmatpush1.msra.mxu0 0.0
    %1836 = vmatprep.subr.mxu0 0.0
    %1837 = vmatpush1.msra.mxu0 0.0
    %1838 = vmatprep.subr.mxu0 0.0
    %1839 = vmatpush1.msra.mxu0 0.0
    %1840 = vmatprep.subr.mxu0 0.0
    %1841 = vmatpush1.msra.mxu0 0.0
    %1842 = vmatprep.subr.mxu0 0.0
    %1843 = vmatpush1.msra.mxu0 0.0
    %1844 = vmatprep.subr.mxu0 0.0
    %1845 = vmatpush1.msra.mxu0 0.0
    %1846 = vmatprep.subr.mxu0 0.0
    %1847 = vmatpush1.msra.mxu0 0.0
    %1848 = vmatprep.mubr.f32.mxu0 0.0
    %1849 = vmatmul.mubr.f32.gmra.mrb[0].mxu0 %v1782
    %v1850 = vpop.f32.mrb[0].mxu0
    %v1851 = vadd.f32 0.0, %v1850
    %v1852 = vpop.f32.mrb[0].mxu0
    %1853 = vdwg.mxu0
    %v1855 = vsel %vm111, %v1765, 0
    %1857 = vmatprep.subr.mxu0 0.0
    %1858 = vmatpush1.msra.mxu0 %v1773
    %1859 = vmatprep.subr.mxu0 0.0
    %1860 = vmatpush1.msra.mxu0 %v1774
    %1861 = vmatprep.subr.mxu0 0.0
    %1862 = vmatpush1.msra.mxu0 %v1775
    %1863 = vmatprep.subr.mxu0 0.0
    %1864 = vmatpush1.msra.mxu0 %v1776
    %1865 = vmatprep.subr.mxu0 0.0
    %1866 = vmatpush1.msra.mxu0 0.0
    %1867 = vmatprep.subr.mxu0 0.0
    %1868 = vmatpush1.msra.mxu0 0.0
    %1869 = vmatprep.subr.mxu0 0.0
    %1870 = vmatpush1.msra.mxu0 0.0
    %1871 = vmatprep.subr.mxu0 0.0
    %1872 = vmatpush1.msra.mxu0 0.0
    %1873 = vmatprep.subr.mxu0 0.0
    %1874 = vmatpush1.msra.mxu0 0.0
    %1875 = vmatprep.subr.mxu0 0.0
    %1876 = vmatpush1.msra.mxu0 0.0
    %1877 = vmatprep.subr.mxu0 0.0
    %1878 = vmatpush1.msra.mxu0 0.0
    %1879 = vmatprep.subr.mxu0 0.0
    %1880 = vmatpush1.msra.mxu0 0.0
    %1881 = vmatprep.subr.mxu0 0.0
    %1882 = vmatpush1.msra.mxu0 0.0
    %1883 = vmatprep.subr.mxu0 0.0
    %1884 = vmatpush1.msra.mxu0 0.0
    %1885 = vmatprep.subr.mxu0 0.0
    %1886 = vmatpush1.msra.mxu0 0.0
    %1887 = vmatprep.subr.mxu0 0.0
    %1888 = vmatpush1.msra.mxu0 0.0
    %1889 = vmatprep.subr.mxu0 0.0
    %1890 = vmatpush1.msra.mxu0 0.0
    %1891 = vmatprep.subr.mxu0 0.0
    %1892 = vmatpush1.msra.mxu0 0.0
    %1893 = vmatprep.subr.mxu0 0.0
    %1894 = vmatpush1.msra.mxu0 0.0
    %1895 = vmatprep.subr.mxu0 0.0
    %1896 = vmatpush1.msra.mxu0 0.0
    %1897 = vmatprep.subr.mxu0 0.0
    %1898 = vmatpush1.msra.mxu0 0.0
    %1899 = vmatprep.subr.mxu0 0.0
    %1900 = vmatpush1.msra.mxu0 0.0
    %1901 = vmatprep.subr.mxu0 0.0
    %1902 = vmatpush1.msra.mxu0 0.0
    %1903 = vmatprep.subr.mxu0 0.0
    %1904 = vmatpush1.msra.mxu0 0.0
    %1905 = vmatprep.subr.mxu0 0.0
    %1906 = vmatpush1.msra.mxu0 0.0
    %1907 = vmatprep.subr.mxu0 0.0
    %1908 = vmatpush1.msra.mxu0 0.0
    %1909 = vmatprep.subr.mxu0 0.0
    %1910 = vmatpush1.msra.mxu0 0.0
    %1911 = vmatprep.subr.mxu0 0.0
    %1912 = vmatpush1.msra.mxu0 0.0
    %1913 = vmatprep.subr.mxu0 0.0
    %1914 = vmatpush1.msra.mxu0 0.0
    %1915 = vmatprep.subr.mxu0 0.0
    %1916 = vmatpush1.msra.mxu0 0.0
    %1917 = vmatprep.subr.mxu0 0.0
    %1918 = vmatpush1.msra.mxu0 0.0
    %1919 = vmatprep.subr.mxu0 0.0
    %1920 = vmatpush1.msra.mxu0 0.0
    %1921 = vmatprep.mubr.f32.mxu0 0.0
    %1922 = vmatmul.mubr.f32.gmra.mrb[0].mxu0 %v1855
    %v1923 = vpop.f32.mrb[0].mxu0
    %v1924 = vadd.f32 %v1851, %v1923
    %v1925 = vpop.f32.mrb[0].mxu0
    %1926 = vdwg.mxu0
    %v1927 = vld [vmem:[%s2 + $0x94] ss:$0 sm:$0xff]
    %v1928 = vadd.f32 %v1924, %v1927
    %v1929 = vld [vmem:[%s2 + $0x95] ss:$0 sm:$0xff]
    %v1930 = vmul.f32 %v1928, %v1929
    %v1931 = vld [vmem:[%s2 + $0x96] ss:$0 sm:$0xff]
    %v1932 = vadd.f32 %v1930, %v1931
    %vm1933 = vcmp.gt.f32.partialorder %v1932, 0.0
    %v1934 = vmin.f32 %v1932, 0.0
    %v1935 = vmul.f32 %v1934, 1.442695
    %v1936 = vpow.pop %v1935
    %v1937 = vsub.f32 %v1936, 1.0
    %v1938 = vsel %vm1933, %v1932, %v1937
    %v1939 = vld [vmem:[%s2 + $0x97] ss:$0 sm:$0xff]
    %v1940 = vld [vmem:[%s2 + $0xa0] ss:$0 sm:$0xff]
    %1942 = vset.pattern.permute.xlu0 0
    %1943 = vperm.xlu0 %1942, %v1940
    %v1944 = vpop.permute.xlu0 %1943
    %v1947 = vsel %vm111, %v1939, 0
    %v1950 = vsel %vm111, %v1938, 0
    %1952 = vmatprep.subr.mxu0 0.0
    %1953 = vmatpush1.xpose.msra.mxu0 %v1950
    %1954 = vmatprep.subr.mxu0 0.0
    %1955 = vmatpush1.xpose.msra.mxu0 0.0
    %1956 = vmatprep.subr.mxu0 0.0
    %1957 = vmatpush1.xpose.msra.mxu0 0.0
    %1958 = vmatprep.subr.mxu0 0.0
    %1959 = vmatpush1.xpose.msra.mxu0 0.0
    %1960 = vmatprep.subr.mxu0 0.0
    %1961 = vmatpush1.xpose.msra.mxu0 0.0
    %1962 = vmatprep.subr.mxu0 0.0
    %1963 = vmatpush1.xpose.msra.mxu0 0.0
    %1964 = vmatprep.subr.mxu0 0.0
    %1965 = vmatpush1.xpose.msra.mxu0 0.0
    %1966 = vmatprep.subr.mxu0 0.0
    %1967 = vmatpush1.xpose.msra.mxu0 0.0
    %1968 = vmatprep.subr.mxu0 0.0
    %1969 = vmatpush1.xpose.msra.mxu0 0.0
    %1970 = vmatprep.subr.mxu0 0.0
    %1971 = vmatpush1.xpose.msra.mxu0 0.0
    %1972 = vmatprep.subr.mxu0 0.0
    %1973 = vmatpush1.xpose.msra.mxu0 0.0
    %1974 = vmatprep.subr.mxu0 0.0
    %1975 = vmatpush1.xpose.msra.mxu0 0.0
    %1976 = vmatprep.subr.mxu0 0.0
    %1977 = vmatpush1.xpose.msra.mxu0 0.0
    %1978 = vmatprep.subr.mxu0 0.0
    %1979 = vmatpush1.xpose.msra.mxu0 0.0
    %1980 = vmatprep.subr.mxu0 0.0
    %1981 = vmatpush1.xpose.msra.mxu0 0.0
    %1982 = vmatprep.subr.mxu0 0.0
    %1983 = vmatpush1.xpose.msra.mxu0 0.0
    %1984 = vmatprep.subr.mxu0 0.0
    %1985 = vmatpush1.xpose.msra.mxu0 0.0
    %1986 = vmatprep.subr.mxu0 0.0
    %1987 = vmatpush1.xpose.msra.mxu0 0.0
    %1988 = vmatprep.subr.mxu0 0.0
    %1989 = vmatpush1.xpose.msra.mxu0 0.0
    %1990 = vmatprep.subr.mxu0 0.0
    %1991 = vmatpush1.xpose.msra.mxu0 0.0
    %1992 = vmatprep.subr.mxu0 0.0
    %1993 = vmatpush1.xpose.msra.mxu0 0.0
    %1994 = vmatprep.subr.mxu0 0.0
    %1995 = vmatpush1.xpose.msra.mxu0 0.0
    %1996 = vmatprep.subr.mxu0 0.0
    %1997 = vmatpush1.xpose.msra.mxu0 0.0
    %1998 = vmatprep.subr.mxu0 0.0
    %1999 = vmatpush1.xpose.msra.mxu0 0.0
    %2000 = vmatprep.subr.mxu0 0.0
    %2001 = vmatpush1.xpose.msra.mxu0 0.0
    %2002 = vmatprep.subr.mxu0 0.0
    %2003 = vmatpush1.xpose.msra.mxu0 0.0
    %2004 = vmatprep.subr.mxu0 0.0
    %2005 = vmatpush1.xpose.msra.mxu0 0.0
    %2006 = vmatprep.subr.mxu0 0.0
    %2007 = vmatpush1.xpose.msra.mxu0 0.0
    %2008 = vmatprep.subr.mxu0 0.0
    %2009 = vmatpush1.xpose.msra.mxu0 0.0
    %2010 = vmatprep.subr.mxu0 0.0
    %2011 = vmatpush1.xpose.msra.mxu0 0.0
    %2012 = vmatprep.subr.mxu0 0.0
    %2013 = vmatpush1.xpose.msra.mxu0 0.0
    %2014 = vmatprep.subr.mxu0 0.0
    %2015 = vmatpush1.xpose.msra.mxu0 0.0
    %2016 = vmatprep.mubr.f32.mxu0 0.0
    %2017 = vmatmul.mubr.f32.gmra.mrb[0].mxu0 %v1947
    %v2018 = vpop.f32.mrb[0].mxu0
    %v2019 = vadd.f32 %v1944, %v2018
    %v2020 = vpop.f32.mrb[0].mxu0
    %2021 = vdwg.mxu0
    %v2022 = vsub.f32 0.0, %v2019
    %v2023 = vmul.f32 %v2022, 1.442695
    %v2024 = vpow.pop %v2023
    %v2025 = vadd.f32 %v2024, 1.0
    %v2026 = vrcp.pop %v2025
    %v2027 = vmul.f32 1.0, %v2026
    %vm2028 = vcmask 57344
    %2029 = vst.msk [vmem:[#allocation2] sm:$0x1] %vm2028, %v2027
    // Predicated region
    $region18: #{tpu_custom_call.1} parent=1 // pred_check
      _
    $region19: #{tpu_custom_call.1} parent=1 // pred_check_branch
      %2031 = sbr.rel (0) target = $region21
    $region20: #{tpu_custom_call.1} parent=1 // pred_region
      %s2033 = ssub.s32 16, 16
      %2034 = vsyncadd [#allocation3], %s2033
      %s2036 = sshll.u32 [#allocation2], 4
      %s2037 = int_to_ptr.vmem [resolvable:$true] %s2036
      %2039 = dma.vmem_to_hbm [thread:$0]  %s2037, 16, %s4, [#allocation3]
    $region21: #{tpu_custom_call.1} parent=1 // pred_fallthru
      _
    // Predicated region
    $region22: #{tpu_custom_call.1} parent=1 // pred_check
      _
    $region23: #{tpu_custom_call.1} parent=1 // pred_check_branch
      %2041 = sbr.rel (0) target = $region25
    $region24: #{tpu_custom_call.1} parent=1 // pred_region
      %2042 = dma.done [#allocation3], 16
    $region25: #{tpu_custom_call.1} parent=1 // pred_fallthru
      _
    %2043 = vsyncpa [#allocation3], 1

</llo_original>
